<compile_context>
chip_gen: v7x
topology: tpu7x:2x2x1
jax: 0.10.0
libtpu: 0.0.40
codegen_flags: <defaults>
</compile_context>

<pallas_src>
import functools

import jax
import jax.numpy as jnp
from jax.experimental import pallas as pl
from jax.experimental.pallas import tpu as pltpu


def _round_up(x, m):
    return ((x + m - 1) // m) * m


def _pick_pixel_tile(hw):
    """Largest 128-multiple tile (<= 4096) dividing the 128-aligned pixel count."""
    hw128 = _round_up(hw, 128)
    k = hw128 // 128
    best = 1
    for d in range(1, k + 1):
        if k % d == 0 and d * 128 <= 4096:
            best = d
    thw = best * 128
    # If divisor-based tiles are tiny for a big map, prefer larger tiles + padding.
    if thw <= 512 and hw128 > 4096:
        thw = 4096
    return thw


# --------------------------------------------------------------------------
# Kernel A: fused single pass over the two feature maps (NCHW-native).
# Block view: t/s are (C, thw);  accumulators are per-batch resident blocks.
# --------------------------------------------------------------------------
def _feature_reduce_kernel(t_ref, s_ref, dist_ref, cht_ref, chs_ref,
                           pt_ref, ps_ref):
    m = pl.program_id(1)

    t = t_ref[...]                                   # (C, thw) f32
    s = s_ref[...]
    d = t - s

    # per-pixel L2 norm over channels (sublane reduction) -> (1, thw)
    col_sq = jnp.sum(d * d, axis=0, keepdims=True)
    dist_part = jnp.sum(jnp.sqrt(col_sq), axis=1, keepdims=True)     # (1, 1)

    # per-channel sums over pixels (lane reduction) -> (C, 1)
    cht_part = jnp.sum(t, axis=1, keepdims=True)
    chs_part = jnp.sum(s, axis=1, keepdims=True)

    # per-pixel channel means (spatial pools), lane-dense (1, thw) outputs
    inv_c = 1.0 / t.shape[0]
    pt_ref[...] = jnp.sum(t, axis=0, keepdims=True) * inv_c
    ps_ref[...] = jnp.sum(s, axis=0, keepdims=True) * inv_c

    @pl.when(m == 0)
    def _init():
        dist_ref[...] = jnp.zeros_like(dist_ref)
        cht_ref[...] = jnp.zeros_like(cht_ref)
        chs_ref[...] = jnp.zeros_like(chs_ref)

    dist_ref[...] += dist_part
    cht_ref[...] += cht_part
    chs_ref[...] += chs_part


def _feature_reductions(teacher_nchw, student_nchw):
    B, C, H, W = teacher_nchw.shape
    HW = H * W

    t = teacher_nchw.reshape(B, C, HW).astype(jnp.float32)
    s = student_nchw.reshape(B, C, HW).astype(jnp.float32)

    # Pixel tiles (multiple of 128 lanes).  Pad (only when needed) with zeros:
    # padded columns contribute 0 to every reduction and pools are sliced off.
    thw = _pick_pixel_tile(HW)
    HWp = _round_up(HW, thw)
    if HWp != HW:
        t = jnp.pad(t, ((0, 0), (0, 0), (0, HWp - HW)))
        s = jnp.pad(s, ((0, 0), (0, 0), (0, HWp - HW)))
    n_m = HWp // thw

    feat_spec = pl.BlockSpec((None, C, thw), lambda b, m: (b, 0, m))
    out_shape = (
        jax.ShapeDtypeStruct((B, 1, 1), jnp.float32),    # sum_hw ||t - s||_2
        jax.ShapeDtypeStruct((B, C, 1), jnp.float32),    # per-channel sums (teacher)
        jax.ShapeDtypeStruct((B, C, 1), jnp.float32),    # per-channel sums (student)
        jax.ShapeDtypeStruct((B, 1, HWp), jnp.float32),  # channel-mean pool (teacher)
        jax.ShapeDtypeStruct((B, 1, HWp), jnp.float32),  # channel-mean pool (student)
    )
    out_specs = (
        pl.BlockSpec((None, 1, 1), lambda b, m: (b, 0, 0)),
        pl.BlockSpec((None, C, 1), lambda b, m: (b, 0, 0)),
        pl.BlockSpec((None, C, 1), lambda b, m: (b, 0, 0)),
        pl.BlockSpec((None, 1, thw), lambda b, m: (b, 0, m)),
        pl.BlockSpec((None, 1, thw), lambda b, m: (b, 0, m)),
    )

    dist_b, cht, chs, pt, ps = pl.pallas_call(
        _feature_reduce_kernel,
        out_shape=out_shape,
        grid=(B, n_m),
        in_specs=[feat_spec, feat_spec],
        out_specs=out_specs,
        compiler_params=pltpu.CompilerParams(
            dimension_semantics=("parallel", "arbitrary")),
    )(t, s)

    dist_sum = jnp.sum(dist_b)            # scalar
    ch_sum_t = cht[:, :, 0]               # (B, C)
    ch_sum_s = chs[:, :, 0]               # (B, C)
    pool_t = pt[:, 0, :HW]                # (B, HW)
    pool_s = ps[:, 0, :HW]                # (B, HW)
    return dist_sum, ch_sum_t, ch_sum_s, pool_t, pool_s


# --------------------------------------------------------------------------
# Kernel B: fused "heads" kernel.
#   channel head : || mean_t - (mean_s @ W + b) ||^2
#   spatial head : || t_pool - conv3x3(s_pool) ||^2   (conv = 9 taps + bias tap)
# --------------------------------------------------------------------------
def _heads_kernel(cmt_ref, cms_ref, wct_ref, bc_ref, taps_ref, wsp_ref, tp_ref,
                  ch_ref, sp_ref, *, n_valid):
    adapted = jnp.dot(cms_ref[...], wct_ref[...],
                      preferred_element_type=jnp.float32) + bc_ref[...]
    bp = adapted.shape[0]
    valid = jax.lax.broadcasted_iota(jnp.int32, (bp, 1), 0) < n_valid
    dch = jnp.where(valid, cmt_ref[...] - adapted, 0.0)
    ch_ref[...] = jnp.sum(jnp.sum(dch * dch, axis=1, keepdims=True),
                          axis=0, keepdims=True)

    conv = jnp.sum(wsp_ref[...] * taps_ref[...], axis=0, keepdims=True)  # (1, M)
    dsp = tp_ref[...] - conv
    sp_ref[...] = jnp.sum(dsp * dsp, axis=1, keepdims=True)


def _heads(ch_mean_t, ch_mean_s, w_ch_t, b_ch, taps, w_sp, t_pool_flat):
    B, C = ch_mean_t.shape
    BP = _round_up(B, 8)
    cmt = jnp.pad(ch_mean_t, ((0, BP - B), (0, 0)))
    cms = jnp.pad(ch_mean_s, ((0, BP - B), (0, 0)))
    n_taps, M = taps.shape

    def _full_spec(shape):
        n = len(shape)
        return pl.BlockSpec(shape, lambda i, n=n: (0,) * n)

    ch_sq, sp_sq = pl.pallas_call(
        functools.partial(_heads_kernel, n_valid=B),
        out_shape=(jax.ShapeDtypeStruct((1, 1), jnp.float32),
                   jax.ShapeDtypeStruct((1, 1), jnp.float32)),
        grid=(1,),
        in_specs=[_full_spec((BP, C)), _full_spec((BP, C)),
                  _full_spec((C, C)), _full_spec((1, C)),
                  _full_spec((n_taps, M)), _full_spec((n_taps, 1)),
                  _full_spec((1, M))],
        out_specs=(_full_spec((1, 1)), _full_spec((1, 1))),
    )(cmt, cms, w_ch_t, b_ch, taps, w_sp, t_pool_flat)
    return ch_sq[0, 0], sp_sq[0, 0]


# --------------------------------------------------------------------------
# Parameters (pre-packed in MXU / tap friendly layout).
# --------------------------------------------------------------------------
def init_params(key):
    k1, k2, k3, k4 = jax.random.split(key, 4)
    bound_l = 1.0 / (128.0 ** 0.5)
    # nn.Linear(128,128): weight stored pre-transposed as (in, out) so x @ W + b.
    ch_w_t = jax.random.uniform(k1, (128, 128), jnp.float32, -bound_l, bound_l)
    ch_b = jax.random.uniform(k2, (1, 128), jnp.float32, -bound_l, bound_l)
    # nn.Conv2d(1,1,3,padding=1): 9 taps (row-major 3x3) + bias packed as (10,1).
    bound_c = 1.0 / 3.0
    sp_w = jax.random.uniform(k3, (9, 1), jnp.float32, -bound_c, bound_c)
    sp_b = jax.random.uniform(k4, (1, 1), jnp.float32, -bound_c, bound_c)
    sp_wb = jnp.concatenate([sp_w, sp_b], axis=0)
    return {"ch_w_t": ch_w_t, "ch_b": ch_b, "sp_wb": sp_wb}


# --------------------------------------------------------------------------
# Forward pass (PKT.forward(f_s, f_t) -> scalar loss).
# In new_loss, teacher_feat = f_s and student_feat = f_t.
# --------------------------------------------------------------------------
@jax.jit
def pkt_forward(params, f_s, f_t):
    teacher, student = f_s, f_t
    B, C, H, W = teacher.shape
    HW = H * W

    dist_sum, ch_sum_t, ch_sum_s, pool_t, pool_s = _feature_reductions(
        teacher, student)

    ch_mean_t = ch_sum_t / HW
    ch_mean_s = ch_sum_s / HW

    # Tiny 1-channel 3x3 tap gather on the pooled (B,H,W) image (plain-JAX glue;
    # ~10*B*H*W floats, negligible next to the feature reads done in-kernel).
    s_img = pool_s.reshape(B, H, W)
    s_pad = jnp.pad(s_img, ((0, 0), (1, 1), (1, 1)))
    taps = [s_pad[:, i:i + H, j:j + W].reshape(-1)
            for i in range(3) for j in range(3)]
    taps.append(jnp.ones((B * HW,), jnp.float32))         # bias tap
    taps = jnp.stack(taps, axis=0)                        # (10, B*HW)
    t_pool_flat = pool_t.reshape(1, B * HW)

    ch_sq, sp_sq = _heads(ch_mean_t, ch_mean_s,
                          params["ch_w_t"], params["ch_b"],
                          taps, params["sp_wb"], t_pool_flat)

    # TODO(synk): final 3-scalar combine (sqrt/scale/add) kept in plain JAX.
    dist_loss = 1e-4 * dist_sum
    kd_channel_loss = 0.2 * jnp.sqrt(ch_sq)
    kd_spatial_loss = 0.02 * jnp.sqrt(sp_sq)
    return dist_loss + kd_channel_loss + kd_spatial_loss


# --------------------------------------------------------------------------
# Pure-JAX reference (mirrors the PyTorch module exactly).
# --------------------------------------------------------------------------
def pkt_reference(params, f_s, f_t):
    teacher, student = f_s, f_t
    B, C, H, W = teacher.shape
    diff = teacher - student
    dist_loss = 1e-4 * jnp.sum(jnp.sqrt(jnp.sum(diff * diff, axis=1)))

    t_mean = jnp.mean(teacher, axis=(2, 3))
    s_mean = jnp.mean(student, axis=(2, 3))
    adapted = s_mean @ params["ch_w_t"] + params["ch_b"][0]
    kd_channel = 0.2 * jnp.sqrt(jnp.sum((t_mean - adapted) ** 2))

    t_pool = jnp.mean(teacher, axis=1)
    s_pool = jnp.mean(student, axis=1)
    s_pad = jnp.pad(s_pool, ((0, 0), (1, 1), (1, 1)))
    w = params["sp_wb"][:9, 0].reshape(3, 3)
    bias = params["sp_wb"][9, 0]
    conv = bias + sum(w[i, j] * s_pad[:, i:i + H, j:j + W]
                      for i in range(3) for j in range(3))
    kd_spatial = 0.02 * jnp.sqrt(jnp.sum((t_pool - conv) ** 2))
    return dist_loss + kd_channel + kd_spatial


if __name__ == "__main__":
    key = jax.random.PRNGKey(0)
    kp, ks, kt = jax.random.split(key, 3)
    params = init_params(kp)

    B, C, H, W = 2, 128, 16, 16          # Linear(128,128) fixes C = 128
    f_s = 0.1 * jax.random.normal(ks, (B, C, H, W), jnp.float32)   # "teacher"
    f_t = 0.1 * jax.random.normal(kt, (B, C, H, W), jnp.float32)   # "student"

    loss = jax.block_until_ready(pkt_forward(params, f_s, f_t))
    ref = jax.block_until_ready(pkt_reference(params, f_s, f_t))

    assert loss.shape == ()
    assert bool(jnp.isfinite(loss))
    assert bool(jnp.allclose(loss, ref, rtol=2e-3, atol=1e-5)), (loss, ref)
    print("KERNEL_OK")
</pallas_src>

<mosaic_0001>
module attributes {stable_mosaic.version = 11 : i64} {
  func.func @_feature_reduce_kernel(%arg0: i32, %arg1: i32, %arg2: memref<1x128x256xf32, #tpu.memory_space<vmem>>, %arg3: memref<1x128x256xf32, #tpu.memory_space<vmem>>, %arg4: memref<1x1x1xf32, #tpu.memory_space<vmem>>, %arg5: memref<1x128x1xf32, #tpu.memory_space<vmem>>, %arg6: memref<1x128x1xf32, #tpu.memory_space<vmem>>, %arg7: memref<1x1x256xf32, #tpu.memory_space<vmem>>, %arg8: memref<1x1x256xf32, #tpu.memory_space<vmem>>) attributes {dimension_semantics = [#tpu.dimension_semantics<parallel>, #tpu.dimension_semantics<arbitrary>], iteration_bounds = array<i64: 2, 1>, scalar_prefetch = 0 : i64, scratch_operands = 0 : i64, tpu.core_type = #tpu.core_type<tc>, window_params = [{transform_indices = @transform_0, window_bounds = array<i64: 1, 128, 256>}, {transform_indices = @transform_1, window_bounds = array<i64: 1, 128, 256>}, {transform_indices = @transform_2, window_bounds = array<i64: 1, 1, 1>}, {transform_indices = @transform_3, window_bounds = array<i64: 1, 128, 1>}, {transform_indices = @transform_4, window_bounds = array<i64: 1, 128, 1>}, {transform_indices = @transform_5, window_bounds = array<i64: 1, 1, 256>}, {transform_indices = @transform_6, window_bounds = array<i64: 1, 1, 256>}]} {
    %c0 = arith.constant 0 : index
    %c0_0 = arith.constant 0 : index
    %c0_1 = arith.constant 0 : index
    %0 = vector.load %arg2[%c0, %c0_0, %c0_1] : memref<1x128x256xf32, #tpu.memory_space<vmem>>, vector<1x128x256xf32>
    %1 = vector.shape_cast %0 : vector<1x128x256xf32> to vector<128x256xf32>
    %c0_2 = arith.constant 0 : index
    %c0_3 = arith.constant 0 : index
    %c0_4 = arith.constant 0 : index
    %2 = vector.load %arg3[%c0_2, %c0_3, %c0_4] : memref<1x128x256xf32, #tpu.memory_space<vmem>>, vector<1x128x256xf32>
    %3 = vector.shape_cast %2 : vector<1x128x256xf32> to vector<128x256xf32>
    %4 = arith.subf %1, %3 : vector<128x256xf32>
    %5 = arith.mulf %4, %4 : vector<128x256xf32>
    %cst = arith.constant dense<0.000000e+00> : vector<256xf32>
    %6 = vector.multi_reduction <add>, %5, %cst [0] : vector<128x256xf32> to vector<256xf32>
    %7 = vector.shape_cast %6 : vector<256xf32> to vector<1x256xf32>
    %8 = math.sqrt %7 : vector<1x256xf32>
    %cst_5 = arith.constant dense<0.000000e+00> : vector<1xf32>
    %9 = vector.multi_reduction <add>, %8, %cst_5 [1] : vector<1x256xf32> to vector<1xf32>
    %10 = vector.shape_cast %9 : vector<1xf32> to vector<1x1xf32>
    %cst_6 = arith.constant dense<0.000000e+00> : vector<128xf32>
    %11 = vector.multi_reduction <add>, %1, %cst_6 [1] : vector<128x256xf32> to vector<128xf32>
    %12 = vector.shape_cast %11 : vector<128xf32> to vector<128x1xf32>
    %cst_7 = arith.constant dense<0.000000e+00> : vector<128xf32>
    %13 = vector.multi_reduction <add>, %3, %cst_7 [1] : vector<128x256xf32> to vector<128xf32>
    %14 = vector.shape_cast %13 : vector<128xf32> to vector<128x1xf32>
    %cst_8 = arith.constant dense<0.000000e+00> : vector<256xf32>
    %15 = vector.multi_reduction <add>, %1, %cst_8 [0] : vector<128x256xf32> to vector<256xf32>
    %16 = vector.shape_cast %15 : vector<256xf32> to vector<1x256xf32>
    %cst_9 = arith.constant 7.812500e-03 : f32
    %17 = vector.broadcast %cst_9 : f32 to vector<1x256xf32>
    %18 = arith.mulf %16, %17 : vector<1x256xf32>
    %c0_10 = arith.constant 0 : index
    %c0_11 = arith.constant 0 : index
    %c0_12 = arith.constant 0 : index
    %19 = vector.load %arg7[%c0_10, %c0_11, %c0_12] : memref<1x1x256xf32, #tpu.memory_space<vmem>>, vector<1x1x256xf32>
    %20 = vector.shape_cast %19 : vector<1x1x256xf32> to vector<1x256xf32>
    %21 = vector.shape_cast %18 : vector<1x256xf32> to vector<1x1x256xf32>
    tpu.vector_store %arg7[%c0_10, %c0_11, %c0_12], %21 {strides = array<i32>} : memref<1x1x256xf32, #tpu.memory_space<vmem>>, vector<1x1x256xf32>,
    %cst_13 = arith.constant dense<0.000000e+00> : vector<256xf32>
    %22 = vector.multi_reduction <add>, %3, %cst_13 [0] : vector<128x256xf32> to vector<256xf32>
    %23 = vector.shape_cast %22 : vector<256xf32> to vector<1x256xf32>
    %cst_14 = arith.constant 7.812500e-03 : f32
    %24 = vector.broadcast %cst_14 : f32 to vector<1x256xf32>
    %25 = arith.mulf %23, %24 : vector<1x256xf32>
    %c0_15 = arith.constant 0 : index
    %c0_16 = arith.constant 0 : index
    %c0_17 = arith.constant 0 : index
    %26 = vector.load %arg8[%c0_15, %c0_16, %c0_17] : memref<1x1x256xf32, #tpu.memory_space<vmem>>, vector<1x1x256xf32>
    %27 = vector.shape_cast %26 : vector<1x1x256xf32> to vector<1x256xf32>
    %28 = vector.shape_cast %25 : vector<1x256xf32> to vector<1x1x256xf32>
    tpu.vector_store %arg8[%c0_15, %c0_16, %c0_17], %28 {strides = array<i32>} : memref<1x1x256xf32, #tpu.memory_space<vmem>>, vector<1x1x256xf32>,
    %c0_i32 = arith.constant 0 : i32
    %29 = arith.cmpi eq, %arg1, %c0_i32 : i32
    %30 = arith.extui %29 : i1 to i32
    %c0_i32_18 = arith.constant 0 : i32
    %31 = arith.cmpi ne, %30, %c0_i32_18 : i32
    scf.if %31 {
      %cst_37 = arith.constant 0.000000e+00 : f32
      %50 = vector.broadcast %cst_37 : f32 to vector<1x1xf32>
      %c0_38 = arith.constant 0 : index
      %c0_39 = arith.constant 0 : index
      %c0_40 = arith.constant 0 : index
      %51 = vector.load %arg4[%c0_38, %c0_39, %c0_40] : memref<1x1x1xf32, #tpu.memory_space<vmem>>, vector<1x1x1xf32>
      %52 = vector.shape_cast %51 : vector<1x1x1xf32> to vector<1x1xf32>
      %53 = vector.shape_cast %50 : vector<1x1xf32> to vector<1x1x1xf32>
      tpu.vector_store %arg4[%c0_38, %c0_39, %c0_40], %53 {strides = array<i32>} : memref<1x1x1xf32, #tpu.memory_space<vmem>>, vector<1x1x1xf32>,
      %cst_41 = arith.constant 0.000000e+00 : f32
      %54 = vector.broadcast %cst_41 : f32 to vector<128x1xf32>
      %c0_42 = arith.constant 0 : index
      %c0_43 = arith.constant 0 : index
      %c0_44 = arith.constant 0 : index
      %55 = vector.load %arg5[%c0_42, %c0_43, %c0_44] : memref<1x128x1xf32, #tpu.memory_space<vmem>>, vector<1x128x1xf32>
      %56 = vector.shape_cast %55 : vector<1x128x1xf32> to vector<128x1xf32>
      %57 = vector.shape_cast %54 : vector<128x1xf32> to vector<1x128x1xf32>
      tpu.vector_store %arg5[%c0_42, %c0_43, %c0_44], %57 {strides = array<i32>} : memref<1x128x1xf32, #tpu.memory_space<vmem>>, vector<1x128x1xf32>,
      %cst_45 = arith.constant 0.000000e+00 : f32
      %58 = vector.broadcast %cst_45 : f32 to vector<128x1xf32>
      %c0_46 = arith.constant 0 : index
      %c0_47 = arith.constant 0 : index
      %c0_48 = arith.constant 0 : index
      %59 = vector.load %arg6[%c0_46, %c0_47, %c0_48] : memref<1x128x1xf32, #tpu.memory_space<vmem>>, vector<1x128x1xf32>
      %60 = vector.shape_cast %59 : vector<1x128x1xf32> to vector<128x1xf32>
      %61 = vector.shape_cast %58 : vector<128x1xf32> to vector<1x128x1xf32>
      tpu.vector_store %arg6[%c0_46, %c0_47, %c0_48], %61 {strides = array<i32>} : memref<1x128x1xf32, #tpu.memory_space<vmem>>, vector<1x128x1xf32>,
    } else {
    }
    %c0_19 = arith.constant 0 : index
    %c0_20 = arith.constant 0 : index
    %c0_21 = arith.constant 0 : index
    %32 = vector.load %arg4[%c0_19, %c0_20, %c0_21] : memref<1x1x1xf32, #tpu.memory_space<vmem>>, vector<1x1x1xf32>
    %33 = vector.shape_cast %32 : vector<1x1x1xf32> to vector<1x1xf32>
    %34 = arith.addf %33, %10 : vector<1x1xf32>
    %c0_22 = arith.constant 0 : index
    %c0_23 = arith.constant 0 : index
    %c0_24 = arith.constant 0 : index
    %35 = vector.load %arg4[%c0_22, %c0_23, %c0_24] : memref<1x1x1xf32, #tpu.memory_space<vmem>>, vector<1x1x1xf32>
    %36 = vector.shape_cast %35 : vector<1x1x1xf32> to vector<1x1xf32>
    %37 = vector.shape_cast %34 : vector<1x1xf32> to vector<1x1x1xf32>
    tpu.vector_store %arg4[%c0_22, %c0_23, %c0_24], %37 {strides = array<i32>} : memref<1x1x1xf32, #tpu.memory_space<vmem>>, vector<1x1x1xf32>,
    %c0_25 = arith.constant 0 : index
    %c0_26 = arith.constant 0 : index
    %c0_27 = arith.constant 0 : index
    %38 = vector.load %arg5[%c0_25, %c0_26, %c0_27] : memref<1x128x1xf32, #tpu.memory_space<vmem>>, vector<1x128x1xf32>
    %39 = vector.shape_cast %38 : vector<1x128x1xf32> to vector<128x1xf32>
    %40 = arith.addf %39, %12 : vector<128x1xf32>
    %c0_28 = arith.constant 0 : index
    %c0_29 = arith.constant 0 : index
    %c0_30 = arith.constant 0 : index
    %41 = vector.load %arg5[%c0_28, %c0_29, %c0_30] : memref<1x128x1xf32, #tpu.memory_space<vmem>>, vector<1x128x1xf32>
    %42 = vector.shape_cast %41 : vector<1x128x1xf32> to vector<128x1xf32>
    %43 = vector.shape_cast %40 : vector<128x1xf32> to vector<1x128x1xf32>
    tpu.vector_store %arg5[%c0_28, %c0_29, %c0_30], %43 {strides = array<i32>} : memref<1x128x1xf32, #tpu.memory_space<vmem>>, vector<1x128x1xf32>,
    %c0_31 = arith.constant 0 : index
    %c0_32 = arith.constant 0 : index
    %c0_33 = arith.constant 0 : index
    %44 = vector.load %arg6[%c0_31, %c0_32, %c0_33] : memref<1x128x1xf32, #tpu.memory_space<vmem>>, vector<1x128x1xf32>
    %45 = vector.shape_cast %44 : vector<1x128x1xf32> to vector<128x1xf32>
    %46 = arith.addf %45, %14 : vector<128x1xf32>
    %c0_34 = arith.constant 0 : index
    %c0_35 = arith.constant 0 : index
    %c0_36 = arith.constant 0 : index
    %47 = vector.load %arg6[%c0_34, %c0_35, %c0_36] : memref<1x128x1xf32, #tpu.memory_space<vmem>>, vector<1x128x1xf32>
    %48 = vector.shape_cast %47 : vector<1x128x1xf32> to vector<128x1xf32>
    %49 = vector.shape_cast %46 : vector<128x1xf32> to vector<1x128x1xf32>
    tpu.vector_store %arg6[%c0_34, %c0_35, %c0_36], %49 {strides = array<i32>} : memref<1x128x1xf32, #tpu.memory_space<vmem>>, vector<1x128x1xf32>,
    return
  }
  func.func @transform_0(%arg0: i32, %arg1: i32) -> (i32, i32, i32) {
    %c0_i32 = arith.constant 0 : i32
    %c0_i32_0 = arith.constant 0 : i32
    return %arg0, %c0_i32, %arg1 : i32, i32, i32
  }
  func.func @transform_1(%arg0: i32, %arg1: i32) -> (i32, i32, i32) {
    %c0_i32 = arith.constant 0 : i32
    %c0_i32_0 = arith.constant 0 : i32
    return %arg0, %c0_i32, %arg1 : i32, i32, i32
  }
  func.func @transform_2(%arg0: i32, %arg1: i32) -> (i32, i32, i32) {
    %c0_i32 = arith.constant 0 : i32
    %c0_i32_0 = arith.constant 0 : i32
    %c0_i32_1 = arith.constant 0 : i32
    return %arg0, %c0_i32, %c0_i32_0 : i32, i32, i32
  }
  func.func @transform_3(%arg0: i32, %arg1: i32) -> (i32, i32, i32) {
    %c0_i32 = arith.constant 0 : i32
    %c0_i32_0 = arith.constant 0 : i32
    %c0_i32_1 = arith.constant 0 : i32
    return %arg0, %c0_i32, %c0_i32_0 : i32, i32, i32
  }
  func.func @transform_4(%arg0: i32, %arg1: i32) -> (i32, i32, i32) {
    %c0_i32 = arith.constant 0 : i32
    %c0_i32_0 = arith.constant 0 : i32
    %c0_i32_1 = arith.constant 0 : i32
    return %arg0, %c0_i32, %c0_i32_0 : i32, i32, i32
  }
  func.func @transform_5(%arg0: i32, %arg1: i32) -> (i32, i32, i32) {
    %c0_i32 = arith.constant 0 : i32
    %c0_i32_0 = arith.constant 0 : i32
    return %arg0, %c0_i32, %arg1 : i32, i32, i32
  }
  func.func @transform_6(%arg0: i32, %arg1: i32) -> (i32, i32, i32) {
    %c0_i32 = arith.constant 0 : i32
    %c0_i32_0 = arith.constant 0 : i32
    return %arg0, %c0_i32, %arg1 : i32, i32, i32
  }
}

module attributes {stable_mosaic.version = 11 : i64} {
  func.func @_heads_kernel(%arg0: i32, %arg1: memref<8x128xf32, #tpu.memory_space<vmem>>, %arg2: memref<8x128xf32, #tpu.memory_space<vmem>>, %arg3: memref<128x128xf32, #tpu.memory_space<vmem>>, %arg4: memref<1x128xf32, #tpu.memory_space<vmem>>, %arg5: memref<10x512xf32, #tpu.memory_space<vmem>>, %arg6: memref<10x1xf32, #tpu.memory_space<vmem>>, %arg7: memref<1x512xf32, #tpu.memory_space<vmem>>, %arg8: memref<1x1xf32, #tpu.memory_space<vmem>>, %arg9: memref<1x1xf32, #tpu.memory_space<vmem>>) attributes {dimension_semantics = [#tpu.dimension_semantics<arbitrary>], iteration_bounds = array<i64: 1>, scalar_prefetch = 0 : i64, scratch_operands = 0 : i64, tpu.core_type = #tpu.core_type<tc>, window_params = [{pipeline_mode = #tpu.pipeline_mode<synchronous>, transform_indices = @transform_0, window_bounds = array<i64: 8, 128>}, {pipeline_mode = #tpu.pipeline_mode<synchronous>, transform_indices = @transform_1, window_bounds = array<i64: 8, 128>}, {pipeline_mode = #tpu.pipeline_mode<synchronous>, transform_indices = @transform_2, window_bounds = array<i64: 128, 128>}, {pipeline_mode = #tpu.pipeline_mode<synchronous>, transform_indices = @transform_3, window_bounds = array<i64: 1, 128>}, {pipeline_mode = #tpu.pipeline_mode<synchronous>, transform_indices = @transform_4, window_bounds = array<i64: 10, 512>}, {pipeline_mode = #tpu.pipeline_mode<synchronous>, transform_indices = @transform_5, window_bounds = array<i64: 10, 1>}, {pipeline_mode = #tpu.pipeline_mode<synchronous>, transform_indices = @transform_6, window_bounds = array<i64: 1, 512>}, {pipeline_mode = #tpu.pipeline_mode<synchronous>, transform_indices = @transform_7, window_bounds = array<i64: 1, 1>}, {pipeline_mode = #tpu.pipeline_mode<synchronous>, transform_indices = @transform_8, window_bounds = array<i64: 1, 1>}]} {
    %c0 = arith.constant 0 : index
    %c0_0 = arith.constant 0 : index
    %0 = vector.load %arg2[%c0, %c0_0] : memref<8x128xf32, #tpu.memory_space<vmem>>, vector<8x128xf32>
    %c0_1 = arith.constant 0 : index
    %c0_2 = arith.constant 0 : index
    %1 = vector.load %arg3[%c0_1, %c0_2] : memref<128x128xf32, #tpu.memory_space<vmem>>, vector<128x128xf32>
    %cst = arith.constant dense<0.000000e+00> : vector<8x128xf32>
    %2 = tpu.matmul %0, %1, %cst {dimension_numbers = #tpu.dot_dimension_numbers<[1], [0], [0], [1], [0, 0, 1, 1], [], []>} : vector<8x128xf32>, vector<128x128xf32>, vector<8x128xf32> -> vector<8x128xf32>
    %c0_3 = arith.constant 0 : index
    %c0_4 = arith.constant 0 : index
    %3 = vector.load %arg4[%c0_3, %c0_4] : memref<1x128xf32, #tpu.memory_space<vmem>>, vector<1x128xf32>
    %4 = vector.broadcast %3 : vector<1x128xf32> to vector<8x128xf32>
    %5 = arith.addf %2, %4 : vector<8x128xf32>
    %6 = tpu.iota {dimensions = array<i32: 0>} : vector<8x1xi32>
    %c2_i32 = arith.constant 2 : i32
    %7 = vector.broadcast %c2_i32 : i32 to vector<8x1xi32>
    %8 = arith.cmpi slt, %6, %7 : vector<8x1xi32>
    %c0_5 = arith.constant 0 : index
    %c0_6 = arith.constant 0 : index
    %9 = vector.load %arg1[%c0_5, %c0_6] : memref<8x128xf32, #tpu.memory_space<vmem>>, vector<8x128xf32>
    %10 = arith.subf %9, %5 : vector<8x128xf32>
    %cst_7 = arith.constant 0.000000e+00 : f32
    %11 = vector.shape_cast %8 : vector<8x1xi1> to vector<8x1xi1>
    %12 = vector.broadcast %11 : vector<8x1xi1> to vector<8x128xi1>
    %13 = vector.broadcast %cst_7 : f32 to vector<8x128xf32>
    %14 = arith.select %12, %10, %13 : vector<8x128xi1>, vector<8x128xf32>
    %15 = arith.mulf %14, %14 : vector<8x128xf32>
    %cst_8 = arith.constant dense<0.000000e+00> : vector<8xf32>
    %16 = vector.multi_reduction <add>, %15, %cst_8 [1] : vector<8x128xf32> to vector<8xf32>
    %17 = vector.shape_cast %16 : vector<8xf32> to vector<8x1xf32>
    %cst_9 = arith.constant dense<0.000000e+00> : vector<1xf32>
    %18 = vector.multi_reduction <add>, %17, %cst_9 [0] : vector<8x1xf32> to vector<1xf32>
    %19 = vector.shape_cast %18 : vector<1xf32> to vector<1x1xf32>
    %c0_10 = arith.constant 0 : index
    %c0_11 = arith.constant 0 : index
    %20 = vector.load %arg8[%c0_10, %c0_11] : memref<1x1xf32, #tpu.memory_space<vmem>>, vector<1x1xf32>
    tpu.vector_store %arg8[%c0_10, %c0_11], %19 {strides = array<i32>} : memref<1x1xf32, #tpu.memory_space<vmem>>, vector<1x1xf32>,
    %c0_12 = arith.constant 0 : index
    %c0_13 = arith.constant 0 : index
    %21 = vector.load %arg6[%c0_12, %c0_13] : memref<10x1xf32, #tpu.memory_space<vmem>>, vector<10x1xf32>
    %c0_14 = arith.constant 0 : index
    %c0_15 = arith.constant 0 : index
    %22 = vector.load %arg5[%c0_14, %c0_15] : memref<10x512xf32, #tpu.memory_space<vmem>>, vector<10x512xf32>
    %23 = vector.broadcast %21 : vector<10x1xf32> to vector<10x512xf32>
    %24 = arith.mulf %23, %22 : vector<10x512xf32>
    %cst_16 = arith.constant dense<0.000000e+00> : vector<512xf32>
    %25 = vector.multi_reduction <add>, %24, %cst_16 [0] : vector<10x512xf32> to vector<512xf32>
    %26 = vector.shape_cast %25 : vector<512xf32> to vector<1x512xf32>
    %c0_17 = arith.constant 0 : index
    %c0_18 = arith.constant 0 : index
    %27 = vector.load %arg7[%c0_17, %c0_18] : memref<1x512xf32, #tpu.memory_space<vmem>>, vector<1x512xf32>
    %28 = arith.subf %27, %26 : vector<1x512xf32>
    %29 = arith.mulf %28, %28 : vector<1x512xf32>
    %cst_19 = arith.constant dense<0.000000e+00> : vector<1xf32>
    %30 = vector.multi_reduction <add>, %29, %cst_19 [1] : vector<1x512xf32> to vector<1xf32>
    %31 = vector.shape_cast %30 : vector<1xf32> to vector<1x1xf32>
    %c0_20 = arith.constant 0 : index
    %c0_21 = arith.constant 0 : index
    %32 = vector.load %arg9[%c0_20, %c0_21] : memref<1x1xf32, #tpu.memory_space<vmem>>, vector<1x1xf32>
    tpu.vector_store %arg9[%c0_20, %c0_21], %31 {strides = array<i32>} : memref<1x1xf32, #tpu.memory_space<vmem>>, vector<1x1xf32>,
    return
  }
  func.func @transform_0(%arg0: i32) -> (i32, i32) {
    %c0_i32 = arith.constant 0 : i32
    %c0_i32_0 = arith.constant 0 : i32
    %c0_i32_1 = arith.constant 0 : i32
    return %c0_i32, %c0_i32_0 : i32, i32
  }
  func.func @transform_1(%arg0: i32) -> (i32, i32) {
    %c0_i32 = arith.constant 0 : i32
    %c0_i32_0 = arith.constant 0 : i32
    %c0_i32_1 = arith.constant 0 : i32
    return %c0_i32, %c0_i32_0 : i32, i32
  }
  func.func @transform_2(%arg0: i32) -> (i32, i32) {
    %c0_i32 = arith.constant 0 : i32
    %c0_i32_0 = arith.constant 0 : i32
    %c0_i32_1 = arith.constant 0 : i32
    return %c0_i32, %c0_i32_0 : i32, i32
  }
  func.func @transform_3(%arg0: i32) -> (i32, i32) {
    %c0_i32 = arith.constant 0 : i32
    %c0_i32_0 = arith.constant 0 : i32
    %c0_i32_1 = arith.constant 0 : i32
    return %c0_i32, %c0_i32_0 : i32, i32
  }
  func.func @transform_4(%arg0: i32) -> (i32, i32) {
    %c0_i32 = arith.constant 0 : i32
    %c0_i32_0 = arith.constant 0 : i32
    %c0_i32_1 = arith.constant 0 : i32
    return %c0_i32, %c0_i32_0 : i32, i32
  }
  func.func @transform_5(%arg0: i32) -> (i32, i32) {
    %c0_i32 = arith.constant 0 : i32
    %c0_i32_0 = arith.constant 0 : i32
    %c0_i32_1 = arith.constant 0 : i32
    return %c0_i32, %c0_i32_0 : i32, i32
  }
  func.func @transform_6(%arg0: i32) -> (i32, i32) {
    %c0_i32 = arith.constant 0 : i32
    %c0_i32_0 = arith.constant 0 : i32
    %c0_i32_1 = arith.constant 0 : i32
    return %c0_i32, %c0_i32_0 : i32, i32
  }
  func.func @transform_7(%arg0: i32) -> (i32, i32) {
    %c0_i32 = arith.constant 0 : i32
    %c0_i32_0 = arith.constant 0 : i32
    %c0_i32_1 = arith.constant 0 : i32
    return %c0_i32, %c0_i32_0 : i32, i32
  }
  func.func @transform_8(%arg0: i32) -> (i32, i32) {
    %c0_i32 = arith.constant 0 : i32
    %c0_i32_0 = arith.constant 0 : i32
    %c0_i32_1 = arith.constant 0 : i32
    return %c0_i32, %c0_i32_0 : i32, i32
  }
}

</mosaic_0001>

<llo_original>
// kernel: squeeze.8
$region0: #{squeeze.8}
  %s0 = inlined_call_operand.vmem [shape: f32[2,256], index: 0, kind: input, shape index: {}]
  %s1 = inlined_call_operand.vmem [shape: f32[2,16,16], index: 1, kind: output, shape index: {}]
  $region1: #{squeeze.8} parent=0
    #allocation0 [shape = 'u8[8192]{0}', space=vmem, size = 0x2000, scoped, tag = 'scoped mem for input reshape']
    %s3 = sshllo.u32 0, 2
    %s4 = scalar_lea.vmem %s0, 2
    %v5 = vld [vmem:[%s4] sm:%s3]
    %s6 = scalar_lea.vmem [#allocation0], 8
    %7 = vst [vmem:[%s6] sm:%s3] %v5
    %v8 = vld [vmem:[%s0] sm:%s3]
    %9 = vst [vmem:[#allocation0] sm:%s3] %v8
    %v10 = vld [vmem:[#allocation0] sm:$0x3]
    %vm11 = vcmask 130048
    %12 = vst.msk [vmem:[%s1] ss:$16 sm:$0x3] %vm11, %v10
    %s13 = scalar_lea.vmem [#allocation0], 8
    %v14 = vld [vmem:[%s13] sm:$0x3]
    %vm15 = vcmask 130048
    %s16 = scalar_lea.vmem %s1, 8
    %17 = vst.msk [vmem:[%s16] ss:$16 sm:$0x3] %vm15, %v14
    %v18 = vld.sshfl [vmem:[#allocation0] sm:$0xff pattern:$0x99999180]
    %19 = vrot.lane.b32.xlu0 %v18, 112
    %v20 = vpop.permute.xlu0 %19
    %vm21 = vcmask 130048
    %s22 = scalar_lea.vmem %s1, 1
    %23 = vst.msk [vmem:[%s22] ss:$8 sm:$0xf] %vm21, %v20
    %v24 = vld.sshfl [vmem:[#allocation0] sm:$0xff pattern:$0x99999180]
    %25 = vrot.lane.b32.xlu0 %v24, 96
    %v26 = vpop.permute.xlu0 %25
    %vm27 = vcmask 130048
    %s28 = scalar_lea.vmem %s1, 2
    %29 = vst.msk [vmem:[%s28] ss:$8 sm:$0xf] %vm27, %v26
    %v30 = vld.sshfl [vmem:[#allocation0] sm:$0xff pattern:$0x99999180]
    %31 = vrot.lane.b32.xlu0 %v30, 80
    %v32 = vpop.permute.xlu0 %31
    %vm33 = vcmask 130048
    %s34 = scalar_lea.vmem %s1, 3
    %35 = vst.msk [vmem:[%s34] ss:$8 sm:$0xf] %vm33, %v32
    %v36 = vld.sshfl [vmem:[#allocation0] sm:$0xff pattern:$0x99999180]
    %37 = vrot.lane.b32.xlu0 %v36, 64
    %v38 = vpop.permute.xlu0 %37
    %vm39 = vcmask 130048
    %s40 = scalar_lea.vmem %s1, 4
    %41 = vst.msk [vmem:[%s40] ss:$8 sm:$0xf] %vm39, %v38
    %v42 = vld.sshfl [vmem:[#allocation0] sm:$0xff pattern:$0x99999180]
    %43 = vrot.lane.b32.xlu0 %v42, 48
    %v44 = vpop.permute.xlu0 %43
    %vm45 = vcmask 130048
    %s46 = scalar_lea.vmem %s1, 5
    %47 = vst.msk [vmem:[%s46] ss:$8 sm:$0xf] %vm45, %v44
    %v48 = vld.sshfl [vmem:[#allocation0] sm:$0xff pattern:$0x99999180]
    %49 = vrot.lane.b32.xlu0 %v48, 32
    %v50 = vpop.permute.xlu0 %49
    %vm51 = vcmask 130048
    %s52 = scalar_lea.vmem %s1, 6
    %53 = vst.msk [vmem:[%s52] ss:$8 sm:$0xf] %vm51, %v50
    %v54 = vld.sshfl [vmem:[#allocation0] sm:$0xff pattern:$0x99999180]
    %55 = vrot.lane.b32.xlu0 %v54, 16
    %v56 = vpop.permute.xlu0 %55
    %vm57 = vcmask 130048
    %s58 = scalar_lea.vmem %s1, 7
    %59 = vst.msk [vmem:[%s58] ss:$8 sm:$0xf] %vm57, %v56

// kernel: pkt_forward.2
$region0: #{pkt_forward.2}
  #allocation0 [shape = 'u32[]', space=smem, size = 0x4, offset = 0x4, fixed_abs, tag = 'smem constant byte address 0x4 - core index']
  #allocation1 [shape = 'u32[144,128]{1,0:T(1,128)}', space=vmem, size = 0x12000, scoped, tag = 'internal scratch']
  %s0 = inlined_call_operand.vmem [shape: f32[2,128,256], index: 0, kind: input, shape index: {}]
  %s1 = inlined_call_operand.vmem [shape: f32[2,128,256], index: 1, kind: input, shape index: {}]
  %s2 = inlined_call_operand.vmem [shape: f32[2,1,1], index: 2, kind: output, shape index: {0}]
  %s3 = inlined_call_operand.vmem [shape: f32[2,128,1], index: 3, kind: output, shape index: {1}]
  %s4 = inlined_call_operand.vmem [shape: f32[2,128,1], index: 4, kind: output, shape index: {2}]
  %s5 = inlined_call_operand.vmem [shape: f32[2,1,256], index: 5, kind: output, shape index: {3}]
  %s6 = inlined_call_operand.vmem [shape: f32[2,1,256], index: 6, kind: output, shape index: {4}]
  %7 = xla_tuple %s2, %s3, %s4, %s5, %s6
  %s8 = sld [smem:[#allocation0]]
  $region77: #{pkt_forward.2} parent=0
    _
  %s10 = ssub.s32 1, %s8
  %s11 = scalar_select 0, %s10, %s8
  loop: start=0, step=1, limit=4
  $region2: #{pkt_forward.2} parent=0 // loop_pre_header
    _
  $region3: #{pkt_forward.2} parent=0 // loop_header
    %s13 = sphi 0, %s17
    %p14 = scmp.ge.s32.totalorder %s13, 4
    %s20 = sphi 0, %s32
    %s21 = sphi 0, %s28
    %s22 = sphi 0, %s20
    %s23 = sphi 0, %s21
    %s24 = sphi 0, %s22
    %s25 = sphi 0, %s23
    %s37 = sphi 0, %s39
    %s40 = sphi 0, %s37
    %s41 = sphi 0, %s40
    %s57 = sphi 0, %s41
    %s65 = sphi 0, %s67
    %s68 = sphi 0, %s65
    %s69 = sphi 0, %s68
    %s85 = sphi 0, %s69
    %s91 = sphi 0, %s93
    %s94 = sphi 0, %s91
    %s95 = sphi 0, %s94
    %s111 = sphi 0, %s95
    %s117 = sphi 0, %s119
    %s120 = sphi 0, %s117
    %s121 = sphi 0, %s120
    %s137 = sphi 0, %s121
    %s143 = sphi 0, %s145
    %s146 = sphi 0, %s143
    %s147 = sphi 0, %s146
    %s163 = sphi 0, %s147
    %s171 = sphi 0, %s173
    %s174 = sphi 0, %s171
    %s175 = sphi 0, %s174
    %s191 = sphi 0, %s175
    %s199 = sphi 0, %s201
    %s202 = sphi 0, %s199
    %s203 = sphi 0, %s202
    %s219 = sphi 0, %s203
  $region4: #{pkt_forward.2} parent=0 // loop_header_branch
    %16 = sbr.rel (%p14) target = $region8
  $region5: #{pkt_forward.2} parent=0 // loop_body
    %s18 = ssub.s32 %s13, 1
    %s19 = ssub.s32 %s13, 2
    %s26 = sadd.s32 1, %s21
    %p27 = scmp.ge.s32.totalorder %s26, 1
    %s28 = scalar_select %p27, 0, %s26
    %s29 = sadd.s32 1, %s20
    %s30 = scalar_select %p27, %s29, %s20
    %p31 = scmp.ge.s32.totalorder %s30, 2
    %s32 = scalar_select %p31, 0, %s30
    %s33 = ssub.s32 %s20, %s32
    %s34 = ssub.s32 %s21, %s28
    %s35 = sor.u32 %s33, %s34
    %p36 = scmp.eq.s32.totalorder %s35, 0
    %s38 = sadd.s32 %s37, 1
    %s39 = scalar_select %p36, %s37, %s38
    %p42 = pneg %p36
    %p43 = scmp.eq.s32.totalorder %s13, 1
    %p44 = por %p42, %p43
    %p45 = scmp.ne.s32.totalorder %s37, %s40
    %p46 = scmp.eq.s32.totalorder %s13, 0
    %p47 = por %p45, %p46
    %p48 = scmp.ne.s32.totalorder %s37, %s40
    %p49 = scmp.eq.s32.totalorder %s18, 1
    %p50 = por %p48, %p49
    %p51 = scmp.ne.s32.totalorder %s40, %s41
    %p52 = scmp.eq.s32.totalorder %s18, 0
    %p53 = por %p51, %p52
    %p54 = scmp.ne.s32.totalorder %s40, %s41
    %p55 = scmp.eq.s32.totalorder %s19, 1
    %p56 = por %p54, %p55
    %p58 = scmp.ne.s32.totalorder %s41, %s57
    %p59 = scmp.eq.s32.totalorder %s19, 0
    %p60 = por %p58, %p59
    %s61 = ssub.s32 %s20, %s32
    %s62 = ssub.s32 %s21, %s28
    %s63 = sor.u32 %s61, %s62
    %p64 = scmp.eq.s32.totalorder %s63, 0
    %s66 = sadd.s32 %s65, 1
    %s67 = scalar_select %p64, %s65, %s66
    %p70 = pneg %p64
    %p71 = scmp.eq.s32.totalorder %s13, 1
    %p72 = por %p70, %p71
    %p73 = scmp.ne.s32.totalorder %s65, %s68
    %p74 = scmp.eq.s32.totalorder %s13, 0
    %p75 = por %p73, %p74
    %p76 = scmp.ne.s32.totalorder %s65, %s68
    %p77 = scmp.eq.s32.totalorder %s18, 1
    %p78 = por %p76, %p77
    %p79 = scmp.ne.s32.totalorder %s68, %s69
    %p80 = scmp.eq.s32.totalorder %s18, 0
    %p81 = por %p79, %p80
    %p82 = scmp.ne.s32.totalorder %s68, %s69
    %p83 = scmp.eq.s32.totalorder %s19, 1
    %p84 = por %p82, %p83
    %p86 = scmp.ne.s32.totalorder %s69, %s85
    %p87 = scmp.eq.s32.totalorder %s19, 0
    %p88 = por %p86, %p87
    %s89 = ssub.s32 %s20, %s32
    %p90 = scmp.eq.s32.totalorder %s89, 0
    %s92 = sadd.s32 %s91, 1
    %s93 = scalar_select %p90, %s91, %s92
    %p96 = pneg %p90
    %p97 = scmp.eq.s32.totalorder %s13, 1
    %p98 = por %p96, %p97
    %p99 = scmp.ne.s32.totalorder %s91, %s94
    %p100 = scmp.eq.s32.totalorder %s13, 0
    %p101 = por %p99, %p100
    %p102 = scmp.ne.s32.totalorder %s91, %s94
    %p103 = scmp.eq.s32.totalorder %s18, 1
    %p104 = por %p102, %p103
    %p105 = scmp.ne.s32.totalorder %s94, %s95
    %p106 = scmp.eq.s32.totalorder %s18, 0
    %p107 = por %p105, %p106
    %p108 = scmp.ne.s32.totalorder %s94, %s95
    %p109 = scmp.eq.s32.totalorder %s19, 1
    %p110 = por %p108, %p109
    %p112 = scmp.ne.s32.totalorder %s95, %s111
    %p113 = scmp.eq.s32.totalorder %s19, 0
    %p114 = por %p112, %p113
    %s115 = ssub.s32 %s20, %s32
    %p116 = scmp.eq.s32.totalorder %s115, 0
    %s118 = sadd.s32 %s117, 1
    %s119 = scalar_select %p116, %s117, %s118
    %p122 = pneg %p116
    %p123 = scmp.eq.s32.totalorder %s13, 1
    %p124 = por %p122, %p123
    %p125 = scmp.ne.s32.totalorder %s117, %s120
    %p126 = scmp.eq.s32.totalorder %s13, 0
    %p127 = por %p125, %p126
    %p128 = scmp.ne.s32.totalorder %s117, %s120
    %p129 = scmp.eq.s32.totalorder %s18, 1
    %p130 = por %p128, %p129
    %p131 = scmp.ne.s32.totalorder %s120, %s121
    %p132 = scmp.eq.s32.totalorder %s18, 0
    %p133 = por %p131, %p132
    %p134 = scmp.ne.s32.totalorder %s120, %s121
    %p135 = scmp.eq.s32.totalorder %s19, 1
    %p136 = por %p134, %p135
    %p138 = scmp.ne.s32.totalorder %s121, %s137
    %p139 = scmp.eq.s32.totalorder %s19, 0
    %p140 = por %p138, %p139
    %s141 = ssub.s32 %s20, %s32
    %p142 = scmp.eq.s32.totalorder %s141, 0
    %s144 = sadd.s32 %s143, 1
    %s145 = scalar_select %p142, %s143, %s144
    %p148 = pneg %p142
    %p149 = scmp.eq.s32.totalorder %s13, 1
    %p150 = por %p148, %p149
    %p151 = scmp.ne.s32.totalorder %s143, %s146
    %p152 = scmp.eq.s32.totalorder %s13, 0
    %p153 = por %p151, %p152
    %p154 = scmp.ne.s32.totalorder %s143, %s146
    %p155 = scmp.eq.s32.totalorder %s18, 1
    %p156 = por %p154, %p155
    %p157 = scmp.ne.s32.totalorder %s146, %s147
    %p158 = scmp.eq.s32.totalorder %s18, 0
    %p159 = por %p157, %p158
    %p160 = scmp.ne.s32.totalorder %s146, %s147
    %p161 = scmp.eq.s32.totalorder %s19, 1
    %p162 = por %p160, %p161
    %p164 = scmp.ne.s32.totalorder %s147, %s163
    %p165 = scmp.eq.s32.totalorder %s19, 0
    %p166 = por %p164, %p165
    %s167 = ssub.s32 %s20, %s32
    %s168 = ssub.s32 %s21, %s28
    %s169 = sor.u32 %s167, %s168
    %p170 = scmp.eq.s32.totalorder %s169, 0
    %s172 = sadd.s32 %s171, 1
    %s173 = scalar_select %p170, %s171, %s172
    %p176 = pneg %p170
    %p177 = scmp.eq.s32.totalorder %s13, 1
    %p178 = por %p176, %p177
    %p179 = scmp.ne.s32.totalorder %s171, %s174
    %p180 = scmp.eq.s32.totalorder %s13, 0
    %p181 = por %p179, %p180
    %p182 = scmp.ne.s32.totalorder %s171, %s174
    %p183 = scmp.eq.s32.totalorder %s18, 1
    %p184 = por %p182, %p183
    %p185 = scmp.ne.s32.totalorder %s174, %s175
    %p186 = scmp.eq.s32.totalorder %s18, 0
    %p187 = por %p185, %p186
    %p188 = scmp.ne.s32.totalorder %s174, %s175
    %p189 = scmp.eq.s32.totalorder %s19, 1
    %p190 = por %p188, %p189
    %p192 = scmp.ne.s32.totalorder %s175, %s191
    %p193 = scmp.eq.s32.totalorder %s19, 0
    %p194 = por %p192, %p193
    %s195 = ssub.s32 %s20, %s32
    %s196 = ssub.s32 %s21, %s28
    %s197 = sor.u32 %s195, %s196
    %p198 = scmp.eq.s32.totalorder %s197, 0
    %s200 = sadd.s32 %s199, 1
    %s201 = scalar_select %p198, %s199, %s200
    %p204 = pneg %p198
    %p205 = scmp.eq.s32.totalorder %s13, 1
    %p206 = por %p204, %p205
    %p207 = scmp.ne.s32.totalorder %s199, %s202
    %p208 = scmp.eq.s32.totalorder %s13, 0
    %p209 = por %p207, %p208
    %p210 = scmp.ne.s32.totalorder %s199, %s202
    %p211 = scmp.eq.s32.totalorder %s18, 1
    %p212 = por %p210, %p211
    %p213 = scmp.ne.s32.totalorder %s202, %s203
    %p214 = scmp.eq.s32.totalorder %s18, 0
    %p215 = por %p213, %p214
    %p216 = scmp.ne.s32.totalorder %s202, %s203
    %p217 = scmp.eq.s32.totalorder %s19, 1
    %p218 = por %p216, %p217
    %p220 = scmp.ne.s32.totalorder %s203, %s219
    %p221 = scmp.eq.s32.totalorder %s19, 0
    %p222 = por %p220, %p221
    %p223 = scmp.le.s32.totalorder 1, %s13
    %p224 = scmp.lt.s32.totalorder %s13, 3
    %p225 = pnand %p223, %p224
    %p226 = pneg %p225
    // Predicated region
    $region9: #{pkt_forward.2} parent=5 // pred_check
      _
    $region10: #{pkt_forward.2} parent=5 // pred_check_branch
      %228 = sbr.rel (%p225) target = $region12
    $region11: #{pkt_forward.2} parent=5 // pred_region
      %s229 = ssub.s32 %s13, 1
    $region12: #{pkt_forward.2} parent=5 // pred_fallthru
      _
    %p230 = scmp.lt.s32.totalorder %s13, 2
    // Predicated region
    $region13: #{pkt_forward.2} parent=5 // pred_check
      %p231 = pneg %p230
    $region14: #{pkt_forward.2} parent=5 // pred_check_branch
      %233 = sbr.rel (%p231) target = $region16
    $region15: #{pkt_forward.2} parent=5 // pred_region
      // Predicated region
      $region17: #{pkt_forward.2} parent=15 // pred_check
        %p234 = pneg %p47
      $region18: #{pkt_forward.2} parent=15 // pred_check_branch
        %236 = sbr.rel (%p234) target = $region20
      $region19: #{pkt_forward.2} parent=15 // pred_region
        %s237 = smul.u32 2, %s21
        %p238 = scmp.lt.s32.totalorder %s20, 1
        %s239 = scalar_select %p238, %s20, 1
        %p240 = scmp.lt.s32.totalorder %s237, 1
        %s241 = scalar_select %p240, %s237, 1
        %s242 = smul.addr %s239, 32
        %s243 = sadd.s32 %s241, %s242
        %s244 = smul.addr %s243, 8
        %s245 = scalar_lea.vmem %s0, %s244
        %s246 = smul.u32 2, %s21
      $region20: #{pkt_forward.2} parent=15 // pred_fallthru
        _
      // Predicated region
      $region21: #{pkt_forward.2} parent=15 // pred_check
        %p247 = pneg %p75
      $region22: #{pkt_forward.2} parent=15 // pred_check_branch
        %249 = sbr.rel (%p247) target = $region24
      $region23: #{pkt_forward.2} parent=15 // pred_region
        %s250 = smul.u32 2, %s21
        %p251 = scmp.lt.s32.totalorder %s20, 1
        %s252 = scalar_select %p251, %s20, 1
        %p253 = scmp.lt.s32.totalorder %s250, 1
        %s254 = scalar_select %p253, %s250, 1
        %s255 = smul.addr %s252, 32
        %s256 = sadd.s32 %s254, %s255
        %s257 = smul.addr %s256, 8
        %s258 = scalar_lea.vmem %s1, %s257
        %s259 = smul.u32 2, %s21
      $region24: #{pkt_forward.2} parent=15 // pred_fallthru
        _
    $region16: #{pkt_forward.2} parent=5 // pred_fallthru
      _
    %p260 = scmp.le.s32.totalorder 1, %s13
    %p261 = scmp.lt.s32.totalorder %s13, 3
    %p262 = pnand %p260, %p261
    %p263 = pneg %p262
    // Predicated region
    $region25: #{pkt_forward.2} parent=5 // pred_check
      _
    $region26: #{pkt_forward.2} parent=5 // pred_check_branch
      %265 = sbr.rel (%p262) target = $region28
    $region27: #{pkt_forward.2} parent=5 // pred_region
      %s266 = ssub.s32 %s13, 1
      %s267 = smul.u32 2, %s23
      %p268 = scmp.lt.s32.totalorder %s22, 1
      %s269 = scalar_select %p268, %s22, 1
      %p270 = scmp.lt.s32.totalorder %s267, 1
      %s271 = scalar_select %p270, %s267, 1
      %s272 = smul.addr %s269, 32
      %s273 = sadd.s32 %s271, %s272
      %s274 = smul.addr %s273, 8
      %s275 = scalar_lea.vmem %s0, %s274
      %p276 = pneg %p53
      %p277 = pneg %p50
      %s278 = smul.u32 2, %s23
      %p279 = scmp.lt.s32.totalorder %s22, 1
      %s280 = scalar_select %p279, %s22, 1
      %p281 = scmp.lt.s32.totalorder %s278, 1
      %s282 = scalar_select %p281, %s278, 1
      %s283 = smul.addr %s280, 32
      %s284 = sadd.s32 %s282, %s283
      %s285 = smul.addr %s284, 8
      %s286 = scalar_lea.vmem %s1, %s285
      %p287 = pneg %p81
      %p288 = pneg %p78
      %p289 = pneg %p107
      %p290 = pneg %p104
      %p291 = scmp.lt.s32.totalorder %s22, 1
      %s292 = scalar_select %p291, %s22, 1
      %s293 = scalar_lea.vmem %s2, %s292
      %p294 = pneg %p133
      %p295 = pneg %p130
      %p296 = scmp.lt.s32.totalorder %s22, 1
      %s297 = scalar_select %p296, %s22, 1
      %s298 = smul.addr %s297, 16
      %s299 = smul.addr %s298, 8
      %s300 = scalar_lea.vmem %s3, %s299
      %p301 = pneg %p159
      %p302 = pneg %p156
      %p303 = scmp.lt.s32.totalorder %s22, 1
      %s304 = scalar_select %p303, %s22, 1
      %s305 = smul.addr %s304, 16
      %s306 = smul.addr %s305, 8
      %s307 = scalar_lea.vmem %s4, %s306
      %p308 = pneg %p187
      %p309 = pneg %p184
      %s310 = smul.u32 2, %s23
      %p311 = scmp.lt.s32.totalorder %s22, 1
      %s312 = scalar_select %p311, %s22, 1
      %p313 = scmp.lt.s32.totalorder %s310, 1
      %s314 = scalar_select %p313, %s310, 1
      %s315 = smul.addr %s312, 2
      %s316 = sadd.s32 %s314, %s315
      %s317 = scalar_lea.vmem %s5, %s316
      %p318 = pneg %p215
      %p319 = pneg %p212
      %s320 = smul.u32 2, %s23
      %p321 = scmp.lt.s32.totalorder %s22, 1
      %s322 = scalar_select %p321, %s22, 1
      %p323 = scmp.lt.s32.totalorder %s320, 1
      %s324 = scalar_select %p323, %s320, 1
      %s325 = smul.addr %s322, 2
      %s326 = sadd.s32 %s324, %s325
      %s327 = scalar_lea.vmem %s6, %s326
      %s328 = smul.u32 2, %s23
      %p329 = scmp.lt.s32.totalorder %s22, 1
      %s330 = scalar_select %p329, %s22, 1
      %p331 = scmp.lt.s32.totalorder %s328, 1
      %s332 = scalar_select %p331, %s328, 1
      %s333 = smul.addr %s330, 32
      %s334 = sadd.s32 %s332, %s333
      %s335 = smul.addr %s334, 8
      %s336 = scalar_lea.vmem %s0, %s335
      %s337 = smul.u32 2, %s23
      %s338 = smul.u32 2, %s23
      %p339 = scmp.lt.s32.totalorder %s22, 1
      %s340 = scalar_select %p339, %s22, 1
      %p341 = scmp.lt.s32.totalorder %s338, 1
      %s342 = scalar_select %p341, %s338, 1
      %s343 = smul.addr %s340, 32
      %s344 = sadd.s32 %s342, %s343
      %s345 = smul.addr %s344, 8
      %s346 = scalar_lea.vmem %s1, %s345
      %s347 = smul.u32 2, %s23
      %p348 = scmp.lt.s32.totalorder %s22, 1
      %s349 = scalar_select %p348, %s22, 1
      %s350 = scalar_lea.vmem %s2, %s349
      %p351 = scmp.lt.s32.totalorder %s22, 1
      %s352 = scalar_select %p351, %s22, 1
      %s353 = smul.addr %s352, 16
      %s354 = smul.addr %s353, 8
      %s355 = scalar_lea.vmem %s3, %s354
      %p356 = scmp.lt.s32.totalorder %s22, 1
      %s357 = scalar_select %p356, %s22, 1
      %s358 = smul.addr %s357, 16
      %s359 = smul.addr %s358, 8
      %s360 = scalar_lea.vmem %s4, %s359
      %s361 = smul.u32 2, %s23
      %p362 = scmp.lt.s32.totalorder %s22, 1
      %s363 = scalar_select %p362, %s22, 1
      %p364 = scmp.lt.s32.totalorder %s361, 1
      %s365 = scalar_select %p364, %s361, 1
      %s366 = smul.addr %s363, 2
      %s367 = sadd.s32 %s365, %s366
      %s368 = scalar_lea.vmem %s5, %s367
      %s369 = smul.u32 2, %s23
      %s370 = smul.u32 2, %s23
      %p371 = scmp.lt.s32.totalorder %s22, 1
      %s372 = scalar_select %p371, %s22, 1
      %p373 = scmp.lt.s32.totalorder %s370, 1
      %s374 = scalar_select %p373, %s370, 1
      %s375 = smul.addr %s372, 2
      %s376 = sadd.s32 %s374, %s375
      %s377 = scalar_lea.vmem %s6, %s376
      %s378 = smul.u32 2, %s23
      %v379 = vld [vmem:[%s336] sm:$0xff]
      %v380 = vld [vmem:[%s336 + $0x8] sm:$0xff]
      %v381 = vld [vmem:[%s336 + $0x10] sm:$0xff]
      %v382 = vld [vmem:[%s336 + $0x18] sm:$0xff]
      %v383 = vld [vmem:[%s336 + $0x20] sm:$0xff]
      %v384 = vld [vmem:[%s336 + $0x28] sm:$0xff]
      %v385 = vld [vmem:[%s336 + $0x30] sm:$0xff]
      %v386 = vld [vmem:[%s336 + $0x38] sm:$0xff]
      %v387 = vld [vmem:[%s336 + $0x40] sm:$0xff]
      %v388 = vld [vmem:[%s336 + $0x48] sm:$0xff]
      %v389 = vld [vmem:[%s336 + $0x50] sm:$0xff]
      %v390 = vld [vmem:[%s336 + $0x58] sm:$0xff]
      %v391 = vld [vmem:[%s336 + $0x60] sm:$0xff]
      %v392 = vld [vmem:[%s336 + $0x68] sm:$0xff]
      %v393 = vld [vmem:[%s336 + $0x70] sm:$0xff]
      %v394 = vld [vmem:[%s336 + $0x78] sm:$0xff]
      %v395 = vld [vmem:[%s336 + $0x80] sm:$0xff]
      %v396 = vld [vmem:[%s336 + $0x88] sm:$0xff]
      %v397 = vld [vmem:[%s336 + $0x90] sm:$0xff]
      %v398 = vld [vmem:[%s336 + $0x98] sm:$0xff]
      %v399 = vld [vmem:[%s336 + $0xa0] sm:$0xff]
      %v400 = vld [vmem:[%s336 + $0xa8] sm:$0xff]
      %v401 = vld [vmem:[%s336 + $0xb0] sm:$0xff]
      %v402 = vld [vmem:[%s336 + $0xb8] sm:$0xff]
      %v403 = vld [vmem:[%s336 + $0xc0] sm:$0xff]
      %v404 = vld [vmem:[%s336 + $0xc8] sm:$0xff]
      %v405 = vld [vmem:[%s336 + $0xd0] sm:$0xff]
      %v406 = vld [vmem:[%s336 + $0xd8] sm:$0xff]
      %v407 = vld [vmem:[%s336 + $0xe0] sm:$0xff]
      %v408 = vld [vmem:[%s336 + $0xe8] sm:$0xff]
      %v409 = vld [vmem:[%s336 + $0xf0] sm:$0xff]
      %v410 = vld [vmem:[%s336 + $0xf8] sm:$0xff]
      %v411 = vld [vmem:[%s346] sm:$0xff]
      %v412 = vld [vmem:[%s346 + $0x8] sm:$0xff]
      %v413 = vld [vmem:[%s346 + $0x10] sm:$0xff]
      %v414 = vld [vmem:[%s346 + $0x18] sm:$0xff]
      %v415 = vld [vmem:[%s346 + $0x20] sm:$0xff]
      %v416 = vld [vmem:[%s346 + $0x28] sm:$0xff]
      %v417 = vld [vmem:[%s346 + $0x30] sm:$0xff]
      %v418 = vld [vmem:[%s346 + $0x38] sm:$0xff]
      %v419 = vld [vmem:[%s346 + $0x40] sm:$0xff]
      %v420 = vld [vmem:[%s346 + $0x48] sm:$0xff]
      %v421 = vld [vmem:[%s346 + $0x50] sm:$0xff]
      %v422 = vld [vmem:[%s346 + $0x58] sm:$0xff]
      %v423 = vld [vmem:[%s346 + $0x60] sm:$0xff]
      %v424 = vld [vmem:[%s346 + $0x68] sm:$0xff]
      %v425 = vld [vmem:[%s346 + $0x70] sm:$0xff]
      %v426 = vld [vmem:[%s346 + $0x78] sm:$0xff]
      %v427 = vld [vmem:[%s346 + $0x80] sm:$0xff]
      %v428 = vld [vmem:[%s346 + $0x88] sm:$0xff]
      %v429 = vld [vmem:[%s346 + $0x90] sm:$0xff]
      %v430 = vld [vmem:[%s346 + $0x98] sm:$0xff]
      %v431 = vld [vmem:[%s346 + $0xa0] sm:$0xff]
      %v432 = vld [vmem:[%s346 + $0xa8] sm:$0xff]
      %v433 = vld [vmem:[%s346 + $0xb0] sm:$0xff]
      %v434 = vld [vmem:[%s346 + $0xb8] sm:$0xff]
      %v435 = vld [vmem:[%s346 + $0xc0] sm:$0xff]
      %v436 = vld [vmem:[%s346 + $0xc8] sm:$0xff]
      %v437 = vld [vmem:[%s346 + $0xd0] sm:$0xff]
      %v438 = vld [vmem:[%s346 + $0xd8] sm:$0xff]
      %v439 = vld [vmem:[%s346 + $0xe0] sm:$0xff]
      %v440 = vld [vmem:[%s346 + $0xe8] sm:$0xff]
      %v441 = vld [vmem:[%s346 + $0xf0] sm:$0xff]
      %v442 = vld [vmem:[%s346 + $0xf8] sm:$0xff]
      %v443 = vsub.f32 %v379, %v411
      %v444 = vsub.f32 %v380, %v412
      %v445 = vsub.f32 %v381, %v413
      %v446 = vsub.f32 %v382, %v414
      %v447 = vsub.f32 %v383, %v415
      %v448 = vsub.f32 %v384, %v416
      %v449 = vsub.f32 %v385, %v417
      %v450 = vsub.f32 %v386, %v418
      %v451 = vsub.f32 %v387, %v419
      %v452 = vsub.f32 %v388, %v420
      %v453 = vsub.f32 %v389, %v421
      %v454 = vsub.f32 %v390, %v422
      %v455 = vsub.f32 %v391, %v423
      %v456 = vsub.f32 %v392, %v424
      %v457 = vsub.f32 %v393, %v425
      %v458 = vsub.f32 %v394, %v426
      %v459 = vsub.f32 %v395, %v427
      %v460 = vsub.f32 %v396, %v428
      %v461 = vsub.f32 %v397, %v429
      %v462 = vsub.f32 %v398, %v430
      %v463 = vsub.f32 %v399, %v431
      %v464 = vsub.f32 %v400, %v432
      %v465 = vsub.f32 %v401, %v433
      %v466 = vsub.f32 %v402, %v434
      %v467 = vsub.f32 %v403, %v435
      %v468 = vsub.f32 %v404, %v436
      %v469 = vsub.f32 %v405, %v437
      %v470 = vsub.f32 %v406, %v438
      %v471 = vsub.f32 %v407, %v439
      %v472 = vsub.f32 %v408, %v440
      %v473 = vsub.f32 %v409, %v441
      %v474 = vsub.f32 %v410, %v442
      %v475 = vmul.f32 %v443, %v443
      %v476 = vmul.f32 %v444, %v444
      %v477 = vmul.f32 %v445, %v445
      %v478 = vmul.f32 %v446, %v446
      %v479 = vmul.f32 %v447, %v447
      %v480 = vmul.f32 %v448, %v448
      %v481 = vmul.f32 %v449, %v449
      %v482 = vmul.f32 %v450, %v450
      %v483 = vmul.f32 %v451, %v451
      %v484 = vmul.f32 %v452, %v452
      %v485 = vmul.f32 %v453, %v453
      %v486 = vmul.f32 %v454, %v454
      %v487 = vmul.f32 %v455, %v455
      %v488 = vmul.f32 %v456, %v456
      %v489 = vmul.f32 %v457, %v457
      %v490 = vmul.f32 %v458, %v458
      %v491 = vmul.f32 %v459, %v459
      %v492 = vmul.f32 %v460, %v460
      %v493 = vmul.f32 %v461, %v461
      %v494 = vmul.f32 %v462, %v462
      %v495 = vmul.f32 %v463, %v463
      %v496 = vmul.f32 %v464, %v464
      %v497 = vmul.f32 %v465, %v465
      %v498 = vmul.f32 %v466, %v466
      %v499 = vmul.f32 %v467, %v467
      %v500 = vmul.f32 %v468, %v468
      %v501 = vmul.f32 %v469, %v469
      %v502 = vmul.f32 %v470, %v470
      %v503 = vmul.f32 %v471, %v471
      %v504 = vmul.f32 %v472, %v472
      %v505 = vmul.f32 %v473, %v473
      %v506 = vmul.f32 %v474, %v474
      %v507 = vadd.f32 %v475, %v477
      %v508 = vadd.f32 %v507, %v479
      %v509 = vadd.f32 %v508, %v481
      %v510 = vadd.f32 %v509, %v483
      %v511 = vadd.f32 %v510, %v485
      %v512 = vadd.f32 %v511, %v487
      %v513 = vadd.f32 %v512, %v489
      %v514 = vadd.f32 %v513, %v491
      %v515 = vadd.f32 %v514, %v493
      %v516 = vadd.f32 %v515, %v495
      %v517 = vadd.f32 %v516, %v497
      %v518 = vadd.f32 %v517, %v499
      %v519 = vadd.f32 %v518, %v501
      %v520 = vadd.f32 %v519, %v503
      %v521 = vadd.f32 %v520, %v505
      %v522 = vrot.slane %v521, 4
      %v523 = vadd.f32 %v521, %v522
      %v524 = vrot.slane %v523, 2
      %v525 = vadd.f32 %v523, %v524
      %v526 = vrot.slane %v525, 1
      %v527 = vadd.f32 %v525, %v526
      %v528 = vadd.f32 %v476, %v478
      %v529 = vadd.f32 %v528, %v480
      %v530 = vadd.f32 %v529, %v482
      %v531 = vadd.f32 %v530, %v484
      %v532 = vadd.f32 %v531, %v486
      %v533 = vadd.f32 %v532, %v488
      %v534 = vadd.f32 %v533, %v490
      %v535 = vadd.f32 %v534, %v492
      %v536 = vadd.f32 %v535, %v494
      %v537 = vadd.f32 %v536, %v496
      %v538 = vadd.f32 %v537, %v498
      %v539 = vadd.f32 %v538, %v500
      %v540 = vadd.f32 %v539, %v502
      %v541 = vadd.f32 %v540, %v504
      %v542 = vadd.f32 %v541, %v506
      %v543 = vrot.slane %v542, 4
      %v544 = vadd.f32 %v542, %v543
      %v545 = vrot.slane %v544, 2
      %v546 = vadd.f32 %v544, %v545
      %v547 = vrot.slane %v546, 1
      %v548 = vadd.f32 %v546, %v547
      %v549 = vrsqrt.pop %v527
      %v550 = vmul.f32 %v527, %v549
      %vm551 = vcmp.eq.f32.partialorder %v527, inf
      %v552 = vsel %vm551, %v527, %v550
      %vm553 = vcmp.eq.f32.partialorder %v527, 0.0
      %v554 = vand.u32 %v527, 2147483648
      %v555 = vsel %vm553, %v554, %v552
      %v556 = vrsqrt.pop %v548
      %v557 = vmul.f32 %v548, %v556
      %vm558 = vcmp.eq.f32.partialorder %v548, inf
      %v559 = vsel %vm558, %v548, %v557
      %vm560 = vcmp.eq.f32.partialorder %v548, 0.0
      %v561 = vand.u32 %v548, 2147483648
      %v562 = vsel %vm560, %v561, %v559
      %v563 = vadd.f32 %v555, %v562
      %564 = vadd.xlane.f32.xlu0 %v563
      %v565 = vpop.xlane.xlu0 %564
      %v566 = vadd.f32 %v379, %v380
      %567 = vadd.xlane.f32.xlu0 %v566
      %v568 = vpop.xlane.xlu0 %567
      %v569 = vadd.f32 %v381, %v382
      %570 = vadd.xlane.f32.xlu0 %v569
      %v571 = vpop.xlane.xlu0 %570
      %v572 = vadd.f32 %v383, %v384
      %573 = vadd.xlane.f32.xlu0 %v572
      %v574 = vpop.xlane.xlu0 %573
      %v575 = vadd.f32 %v385, %v386
      %576 = vadd.xlane.f32.xlu0 %v575
      %v577 = vpop.xlane.xlu0 %576
      %v578 = vadd.f32 %v387, %v388
      %579 = vadd.xlane.f32.xlu0 %v578
      %v580 = vpop.xlane.xlu0 %579
      %v581 = vadd.f32 %v389, %v390
      %582 = vadd.xlane.f32.xlu0 %v581
      %v583 = vpop.xlane.xlu0 %582
      %v584 = vadd.f32 %v391, %v392
      %585 = vadd.xlane.f32.xlu0 %v584
      %v586 = vpop.xlane.xlu0 %585
      %v587 = vadd.f32 %v393, %v394
      %588 = vadd.xlane.f32.xlu0 %v587
      %v589 = vpop.xlane.xlu0 %588
      %v590 = vadd.f32 %v395, %v396
      %591 = vadd.xlane.f32.xlu0 %v590
      %v592 = vpop.xlane.xlu0 %591
      %v593 = vadd.f32 %v397, %v398
      %594 = vadd.xlane.f32.xlu0 %v593
      %v595 = vpop.xlane.xlu0 %594
      %v596 = vadd.f32 %v399, %v400
      %597 = vadd.xlane.f32.xlu0 %v596
      %v598 = vpop.xlane.xlu0 %597
      %v599 = vadd.f32 %v401, %v402
      %600 = vadd.xlane.f32.xlu0 %v599
      %v601 = vpop.xlane.xlu0 %600
      %v602 = vadd.f32 %v403, %v404
      %603 = vadd.xlane.f32.xlu0 %v602
      %v604 = vpop.xlane.xlu0 %603
      %v605 = vadd.f32 %v405, %v406
      %606 = vadd.xlane.f32.xlu0 %v605
      %v607 = vpop.xlane.xlu0 %606
      %v608 = vadd.f32 %v407, %v408
      %609 = vadd.xlane.f32.xlu0 %v608
      %v610 = vpop.xlane.xlu0 %609
      %v611 = vadd.f32 %v409, %v410
      %612 = vadd.xlane.f32.xlu0 %v611
      %v613 = vpop.xlane.xlu0 %612
      %v614 = vadd.f32 %v411, %v412
      %615 = vadd.xlane.f32.xlu0 %v614
      %v616 = vpop.xlane.xlu0 %615
      %v617 = vadd.f32 %v413, %v414
      %618 = vadd.xlane.f32.xlu0 %v617
      %v619 = vpop.xlane.xlu0 %618
      %v620 = vadd.f32 %v415, %v416
      %621 = vadd.xlane.f32.xlu0 %v620
      %v622 = vpop.xlane.xlu0 %621
      %v623 = vadd.f32 %v417, %v418
      %624 = vadd.xlane.f32.xlu0 %v623
      %v625 = vpop.xlane.xlu0 %624
      %v626 = vadd.f32 %v419, %v420
      %627 = vadd.xlane.f32.xlu0 %v626
      %v628 = vpop.xlane.xlu0 %627
      %v629 = vadd.f32 %v421, %v422
      %630 = vadd.xlane.f32.xlu0 %v629
      %v631 = vpop.xlane.xlu0 %630
      %v632 = vadd.f32 %v423, %v424
      %633 = vadd.xlane.f32.xlu0 %v632
      %v634 = vpop.xlane.xlu0 %633
      %v635 = vadd.f32 %v425, %v426
      %636 = vadd.xlane.f32.xlu0 %v635
      %v637 = vpop.xlane.xlu0 %636
      %v638 = vadd.f32 %v427, %v428
      %639 = vadd.xlane.f32.xlu0 %v638
      %v640 = vpop.xlane.xlu0 %639
      %v641 = vadd.f32 %v429, %v430
      %642 = vadd.xlane.f32.xlu0 %v641
      %v643 = vpop.xlane.xlu0 %642
      %v644 = vadd.f32 %v431, %v432
      %645 = vadd.xlane.f32.xlu0 %v644
      %v646 = vpop.xlane.xlu0 %645
      %v647 = vadd.f32 %v433, %v434
      %648 = vadd.xlane.f32.xlu0 %v647
      %v649 = vpop.xlane.xlu0 %648
      %v650 = vadd.f32 %v435, %v436
      %651 = vadd.xlane.f32.xlu0 %v650
      %v652 = vpop.xlane.xlu0 %651
      %v653 = vadd.f32 %v437, %v438
      %654 = vadd.xlane.f32.xlu0 %v653
      %v655 = vpop.xlane.xlu0 %654
      %v656 = vadd.f32 %v439, %v440
      %657 = vadd.xlane.f32.xlu0 %v656
      %v658 = vpop.xlane.xlu0 %657
      %v659 = vadd.f32 %v441, %v442
      %660 = vadd.xlane.f32.xlu0 %v659
      %v661 = vpop.xlane.xlu0 %660
      %v662 = vadd.f32 %v379, %v381
      %v663 = vadd.f32 %v662, %v383
      %v664 = vadd.f32 %v663, %v385
      %v665 = vadd.f32 %v664, %v387
      %v666 = vadd.f32 %v665, %v389
      %v667 = vadd.f32 %v666, %v391
      %v668 = vadd.f32 %v667, %v393
      %v669 = vadd.f32 %v668, %v395
      %v670 = vadd.f32 %v669, %v397
      %v671 = vadd.f32 %v670, %v399
      %v672 = vadd.f32 %v671, %v401
      %v673 = vadd.f32 %v672, %v403
      %v674 = vadd.f32 %v673, %v405
      %v675 = vadd.f32 %v674, %v407
      %v676 = vadd.f32 %v675, %v409
      %v677 = vrot.slane %v676, 4
      %v678 = vadd.f32 %v676, %v677
      %v679 = vrot.slane %v678, 2
      %v680 = vadd.f32 %v678, %v679
      %v681 = vrot.slane %v680, 1
      %v682 = vadd.f32 %v680, %v681
      %v683 = vadd.f32 %v380, %v382
      %v684 = vadd.f32 %v683, %v384
      %v685 = vadd.f32 %v684, %v386
      %v686 = vadd.f32 %v685, %v388
      %v687 = vadd.f32 %v686, %v390
      %v688 = vadd.f32 %v687, %v392
      %v689 = vadd.f32 %v688, %v394
      %v690 = vadd.f32 %v689, %v396
      %v691 = vadd.f32 %v690, %v398
      %v692 = vadd.f32 %v691, %v400
      %v693 = vadd.f32 %v692, %v402
      %v694 = vadd.f32 %v693, %v404
      %v695 = vadd.f32 %v694, %v406
      %v696 = vadd.f32 %v695, %v408
      %v697 = vadd.f32 %v696, %v410
      %v698 = vrot.slane %v697, 4
      %v699 = vadd.f32 %v697, %v698
      %v700 = vrot.slane %v699, 2
      %v701 = vadd.f32 %v699, %v700
      %v702 = vrot.slane %v701, 1
      %v703 = vadd.f32 %v701, %v702
      %v704 = vmul.f32 %v682, 0.0078125
      %v705 = vmul.f32 %v703, 0.0078125
      %v708 = vcombine.low %v704, %v705
      %v710 = vunpack.c.l.s4 1966171168
      %v711 = vunpack.c.0.s8 %v710
      %v712 = vlaneseq
      %v713 = vshrl.u32 %v712, 7
      %v714 = vsub.s32 %v711, %v713
      %v715 = vrot.slane %v708, %v714
      %v717 = vunpack.c.l.s4 1966171168
      %v718 = vunpack.c.0.s8 %v717
      %v719 = vlaneseq
      %v720 = vshrl.u32 %v719, 7
      %v721 = vsub.s32 %v718, %v720
      %v722 = vrot.slane %v715, %v721
      %v724 = vlaneseq
      %vm725 = vcmp.ge.s32.totalorder %v724, 0
      %vm726 = vcmp.lt.s32.totalorder %v724, 256
      %vm727 = vmand %vm725, %vm726
      %728 = vst.msk [vmem:[%s368] sm:$0x3] %vm727, %v722
      %v729 = vadd.f32 %v411, %v413
      %v730 = vadd.f32 %v729, %v415
      %v731 = vadd.f32 %v730, %v417
      %v732 = vadd.f32 %v731, %v419
      %v733 = vadd.f32 %v732, %v421
      %v734 = vadd.f32 %v733, %v423
      %v735 = vadd.f32 %v734, %v425
      %v736 = vadd.f32 %v735, %v427
      %v737 = vadd.f32 %v736, %v429
      %v738 = vadd.f32 %v737, %v431
      %v739 = vadd.f32 %v738, %v433
      %v740 = vadd.f32 %v739, %v435
      %v741 = vadd.f32 %v740, %v437
      %v742 = vadd.f32 %v741, %v439
      %v743 = vadd.f32 %v742, %v441
      %v744 = vrot.slane %v743, 4
      %v745 = vadd.f32 %v743, %v744
      %v746 = vrot.slane %v745, 2
      %v747 = vadd.f32 %v745, %v746
      %v748 = vrot.slane %v747, 1
      %v749 = vadd.f32 %v747, %v748
      %v750 = vadd.f32 %v412, %v414
      %v751 = vadd.f32 %v750, %v416
      %v752 = vadd.f32 %v751, %v418
      %v753 = vadd.f32 %v752, %v420
      %v754 = vadd.f32 %v753, %v422
      %v755 = vadd.f32 %v754, %v424
      %v756 = vadd.f32 %v755, %v426
      %v757 = vadd.f32 %v756, %v428
      %v758 = vadd.f32 %v757, %v430
      %v759 = vadd.f32 %v758, %v432
      %v760 = vadd.f32 %v759, %v434
      %v761 = vadd.f32 %v760, %v436
      %v762 = vadd.f32 %v761, %v438
      %v763 = vadd.f32 %v762, %v440
      %v764 = vadd.f32 %v763, %v442
      %v765 = vrot.slane %v764, 4
      %v766 = vadd.f32 %v764, %v765
      %v767 = vrot.slane %v766, 2
      %v768 = vadd.f32 %v766, %v767
      %v769 = vrot.slane %v768, 1
      %v770 = vadd.f32 %v768, %v769
      %v771 = vmul.f32 %v749, 0.0078125
      %v772 = vmul.f32 %v770, 0.0078125
      %v775 = vcombine.low %v771, %v772
      %v777 = vunpack.c.l.s4 1966171168
      %v778 = vunpack.c.0.s8 %v777
      %v779 = vlaneseq
      %v780 = vshrl.u32 %v779, 7
      %v781 = vsub.s32 %v778, %v780
      %v782 = vrot.slane %v775, %v781
      %v784 = vunpack.c.l.s4 1966171168
      %v785 = vunpack.c.0.s8 %v784
      %v786 = vlaneseq
      %v787 = vshrl.u32 %v786, 7
      %v788 = vsub.s32 %v785, %v787
      %v789 = vrot.slane %v782, %v788
      %791 = vst.msk [vmem:[%s377] sm:$0x3] %vm727, %v789
      %p792 = scmp.eq.s32.totalorder %s23, 0
      // Predicated region
      $region29: #{pkt_forward.2} parent=27 // pred_check
        %p793 = pneg %p792
      $region30: #{pkt_forward.2} parent=27 // pred_check_branch
        %795 = sbr.rel (%p793) target = $region32
      $region31: #{pkt_forward.2} parent=27 // pred_region
        %vm796 = vcmask 0
        %797 = vst.msk [vmem:[%s350] sm:$0x1] %vm796, 0.0
        %vm798 = vcmask 7168
        %799 = vst.msk [vmem:[%s355] sm:$0xff] %vm798, 0.0
        %800 = vst.msk [vmem:[%s355 + $0x8] sm:$0xff] %vm798, 0.0
        %801 = vst.msk [vmem:[%s355 + $0x10] sm:$0xff] %vm798, 0.0
        %802 = vst.msk [vmem:[%s355 + $0x18] sm:$0xff] %vm798, 0.0
        %803 = vst.msk [vmem:[%s355 + $0x20] sm:$0xff] %vm798, 0.0
        %804 = vst.msk [vmem:[%s355 + $0x28] sm:$0xff] %vm798, 0.0
        %805 = vst.msk [vmem:[%s355 + $0x30] sm:$0xff] %vm798, 0.0
        %806 = vst.msk [vmem:[%s355 + $0x38] sm:$0xff] %vm798, 0.0
        %807 = vst.msk [vmem:[%s355 + $0x40] sm:$0xff] %vm798, 0.0
        %808 = vst.msk [vmem:[%s355 + $0x48] sm:$0xff] %vm798, 0.0
        %809 = vst.msk [vmem:[%s355 + $0x50] sm:$0xff] %vm798, 0.0
        %810 = vst.msk [vmem:[%s355 + $0x58] sm:$0xff] %vm798, 0.0
        %811 = vst.msk [vmem:[%s355 + $0x60] sm:$0xff] %vm798, 0.0
        %812 = vst.msk [vmem:[%s355 + $0x68] sm:$0xff] %vm798, 0.0
        %813 = vst.msk [vmem:[%s355 + $0x70] sm:$0xff] %vm798, 0.0
        %814 = vst.msk [vmem:[%s355 + $0x78] sm:$0xff] %vm798, 0.0
        %815 = vst.msk [vmem:[%s360] sm:$0xff] %vm798, 0.0
        %816 = vst.msk [vmem:[%s360 + $0x8] sm:$0xff] %vm798, 0.0
        %817 = vst.msk [vmem:[%s360 + $0x10] sm:$0xff] %vm798, 0.0
        %818 = vst.msk [vmem:[%s360 + $0x18] sm:$0xff] %vm798, 0.0
        %819 = vst.msk [vmem:[%s360 + $0x20] sm:$0xff] %vm798, 0.0
        %820 = vst.msk [vmem:[%s360 + $0x28] sm:$0xff] %vm798, 0.0
        %821 = vst.msk [vmem:[%s360 + $0x30] sm:$0xff] %vm798, 0.0
        %822 = vst.msk [vmem:[%s360 + $0x38] sm:$0xff] %vm798, 0.0
        %823 = vst.msk [vmem:[%s360 + $0x40] sm:$0xff] %vm798, 0.0
        %824 = vst.msk [vmem:[%s360 + $0x48] sm:$0xff] %vm798, 0.0
        %825 = vst.msk [vmem:[%s360 + $0x50] sm:$0xff] %vm798, 0.0
        %826 = vst.msk [vmem:[%s360 + $0x58] sm:$0xff] %vm798, 0.0
        %827 = vst.msk [vmem:[%s360 + $0x60] sm:$0xff] %vm798, 0.0
        %828 = vst.msk [vmem:[%s360 + $0x68] sm:$0xff] %vm798, 0.0
        %829 = vst.msk [vmem:[%s360 + $0x70] sm:$0xff] %vm798, 0.0
        %830 = vst.msk [vmem:[%s360 + $0x78] sm:$0xff] %vm798, 0.0
      $region32: #{pkt_forward.2} parent=27 // pred_fallthru
        _
      %v831 = vld [vmem:[%s350] sm:$0x1]
      %v832 = vadd.f32 %v831, %v565
      %vm833 = vcmask 0
      %834 = vst.msk [vmem:[%s350] sm:$0x1] %vm833, %v832
      %v835 = vld [vmem:[%s355] sm:$0xff]
      %v836 = vld [vmem:[%s355 + $0x8] sm:$0xff]
      %v837 = vld [vmem:[%s355 + $0x10] sm:$0xff]
      %v838 = vld [vmem:[%s355 + $0x18] sm:$0xff]
      %v839 = vld [vmem:[%s355 + $0x20] sm:$0xff]
      %v840 = vld [vmem:[%s355 + $0x28] sm:$0xff]
      %v841 = vld [vmem:[%s355 + $0x30] sm:$0xff]
      %v842 = vld [vmem:[%s355 + $0x38] sm:$0xff]
      %v843 = vld [vmem:[%s355 + $0x40] sm:$0xff]
      %v844 = vld [vmem:[%s355 + $0x48] sm:$0xff]
      %v845 = vld [vmem:[%s355 + $0x50] sm:$0xff]
      %v846 = vld [vmem:[%s355 + $0x58] sm:$0xff]
      %v847 = vld [vmem:[%s355 + $0x60] sm:$0xff]
      %v848 = vld [vmem:[%s355 + $0x68] sm:$0xff]
      %v849 = vld [vmem:[%s355 + $0x70] sm:$0xff]
      %v850 = vld [vmem:[%s355 + $0x78] sm:$0xff]
      %v851 = vadd.f32 %v835, %v568
      %v852 = vadd.f32 %v836, %v571
      %v853 = vadd.f32 %v837, %v574
      %v854 = vadd.f32 %v838, %v577
      %v855 = vadd.f32 %v839, %v580
      %v856 = vadd.f32 %v840, %v583
      %v857 = vadd.f32 %v841, %v586
      %v858 = vadd.f32 %v842, %v589
      %v859 = vadd.f32 %v843, %v592
      %v860 = vadd.f32 %v844, %v595
      %v861 = vadd.f32 %v845, %v598
      %v862 = vadd.f32 %v846, %v601
      %v863 = vadd.f32 %v847, %v604
      %v864 = vadd.f32 %v848, %v607
      %v865 = vadd.f32 %v849, %v610
      %v866 = vadd.f32 %v850, %v613
      %vm867 = vcmask 7168
      %868 = vst.msk [vmem:[%s355] sm:$0xff] %vm867, %v851
      %869 = vst.msk [vmem:[%s355 + $0x8] sm:$0xff] %vm867, %v852
      %870 = vst.msk [vmem:[%s355 + $0x10] sm:$0xff] %vm867, %v853
      %871 = vst.msk [vmem:[%s355 + $0x18] sm:$0xff] %vm867, %v854
      %872 = vst.msk [vmem:[%s355 + $0x20] sm:$0xff] %vm867, %v855
      %873 = vst.msk [vmem:[%s355 + $0x28] sm:$0xff] %vm867, %v856
      %874 = vst.msk [vmem:[%s355 + $0x30] sm:$0xff] %vm867, %v857
      %875 = vst.msk [vmem:[%s355 + $0x38] sm:$0xff] %vm867, %v858
      %876 = vst.msk [vmem:[%s355 + $0x40] sm:$0xff] %vm867, %v859
      %877 = vst.msk [vmem:[%s355 + $0x48] sm:$0xff] %vm867, %v860
      %878 = vst.msk [vmem:[%s355 + $0x50] sm:$0xff] %vm867, %v861
      %879 = vst.msk [vmem:[%s355 + $0x58] sm:$0xff] %vm867, %v862
      %880 = vst.msk [vmem:[%s355 + $0x60] sm:$0xff] %vm867, %v863
      %881 = vst.msk [vmem:[%s355 + $0x68] sm:$0xff] %vm867, %v864
      %882 = vst.msk [vmem:[%s355 + $0x70] sm:$0xff] %vm867, %v865
      %883 = vst.msk [vmem:[%s355 + $0x78] sm:$0xff] %vm867, %v866
      %v884 = vld [vmem:[%s360] sm:$0xff]
      %v885 = vld [vmem:[%s360 + $0x8] sm:$0xff]
      %v886 = vld [vmem:[%s360 + $0x10] sm:$0xff]
      %v887 = vld [vmem:[%s360 + $0x18] sm:$0xff]
      %v888 = vld [vmem:[%s360 + $0x20] sm:$0xff]
      %v889 = vld [vmem:[%s360 + $0x28] sm:$0xff]
      %v890 = vld [vmem:[%s360 + $0x30] sm:$0xff]
      %v891 = vld [vmem:[%s360 + $0x38] sm:$0xff]
      %v892 = vld [vmem:[%s360 + $0x40] sm:$0xff]
      %v893 = vld [vmem:[%s360 + $0x48] sm:$0xff]
      %v894 = vld [vmem:[%s360 + $0x50] sm:$0xff]
      %v895 = vld [vmem:[%s360 + $0x58] sm:$0xff]
      %v896 = vld [vmem:[%s360 + $0x60] sm:$0xff]
      %v897 = vld [vmem:[%s360 + $0x68] sm:$0xff]
      %v898 = vld [vmem:[%s360 + $0x70] sm:$0xff]
      %v899 = vld [vmem:[%s360 + $0x78] sm:$0xff]
      %v900 = vadd.f32 %v884, %v616
      %v901 = vadd.f32 %v885, %v619
      %v902 = vadd.f32 %v886, %v622
      %v903 = vadd.f32 %v887, %v625
      %v904 = vadd.f32 %v888, %v628
      %v905 = vadd.f32 %v889, %v631
      %v906 = vadd.f32 %v890, %v634
      %v907 = vadd.f32 %v891, %v637
      %v908 = vadd.f32 %v892, %v640
      %v909 = vadd.f32 %v893, %v643
      %v910 = vadd.f32 %v894, %v646
      %v911 = vadd.f32 %v895, %v649
      %v912 = vadd.f32 %v896, %v652
      %v913 = vadd.f32 %v897, %v655
      %v914 = vadd.f32 %v898, %v658
      %v915 = vadd.f32 %v899, %v661
      %916 = vst.msk [vmem:[%s360] sm:$0xff] %vm867, %v900
      %917 = vst.msk [vmem:[%s360 + $0x8] sm:$0xff] %vm867, %v901
      %918 = vst.msk [vmem:[%s360 + $0x10] sm:$0xff] %vm867, %v902
      %919 = vst.msk [vmem:[%s360 + $0x18] sm:$0xff] %vm867, %v903
      %920 = vst.msk [vmem:[%s360 + $0x20] sm:$0xff] %vm867, %v904
      %921 = vst.msk [vmem:[%s360 + $0x28] sm:$0xff] %vm867, %v905
      %922 = vst.msk [vmem:[%s360 + $0x30] sm:$0xff] %vm867, %v906
      %923 = vst.msk [vmem:[%s360 + $0x38] sm:$0xff] %vm867, %v907
      %924 = vst.msk [vmem:[%s360 + $0x40] sm:$0xff] %vm867, %v908
      %925 = vst.msk [vmem:[%s360 + $0x48] sm:$0xff] %vm867, %v909
      %926 = vst.msk [vmem:[%s360 + $0x50] sm:$0xff] %vm867, %v910
      %927 = vst.msk [vmem:[%s360 + $0x58] sm:$0xff] %vm867, %v911
      %928 = vst.msk [vmem:[%s360 + $0x60] sm:$0xff] %vm867, %v912
      %929 = vst.msk [vmem:[%s360 + $0x68] sm:$0xff] %vm867, %v913
      %930 = vst.msk [vmem:[%s360 + $0x70] sm:$0xff] %vm867, %v914
      %931 = vst.msk [vmem:[%s360 + $0x78] sm:$0xff] %vm867, %v915
      %p932 = scmp.lt.s32.totalorder %s22, 1
      %s933 = scalar_select %p932, %s22, 1
      %s934 = scalar_lea.vmem %s2, %s933
      %p935 = scmp.lt.s32.totalorder %s22, 1
      %s936 = scalar_select %p935, %s22, 1
      %s937 = smul.addr %s936, 16
      %s938 = smul.addr %s937, 8
      %s939 = scalar_lea.vmem %s3, %s938
      %p940 = scmp.lt.s32.totalorder %s22, 1
      %s941 = scalar_select %p940, %s22, 1
      %s942 = smul.addr %s941, 16
      %s943 = smul.addr %s942, 8
      %s944 = scalar_lea.vmem %s4, %s943
      %s945 = smul.u32 2, %s23
      %p946 = scmp.lt.s32.totalorder %s22, 1
      %s947 = scalar_select %p946, %s22, 1
      %p948 = scmp.lt.s32.totalorder %s945, 1
      %s949 = scalar_select %p948, %s945, 1
      %s950 = smul.addr %s947, 2
      %s951 = sadd.s32 %s949, %s950
      %s952 = scalar_lea.vmem %s5, %s951
      %s953 = smul.u32 2, %s23
      %p954 = scmp.lt.s32.totalorder %s22, 1
      %s955 = scalar_select %p954, %s22, 1
      %p956 = scmp.lt.s32.totalorder %s953, 1
      %s957 = scalar_select %p956, %s953, 1
      %s958 = smul.addr %s955, 2
      %s959 = sadd.s32 %s957, %s958
      %s960 = scalar_lea.vmem %s6, %s959
      // Predicated region
      $region33: #{pkt_forward.2} parent=27 // pred_check
        %p961 = pneg %p104
      $region34: #{pkt_forward.2} parent=27 // pred_check_branch
        %963 = sbr.rel (%p961) target = $region36
      $region35: #{pkt_forward.2} parent=27 // pred_region
        _
      $region36: #{pkt_forward.2} parent=27 // pred_fallthru
        _
      // Predicated region
      $region37: #{pkt_forward.2} parent=27 // pred_check
        %p964 = pneg %p130
      $region38: #{pkt_forward.2} parent=27 // pred_check_branch
        %966 = sbr.rel (%p964) target = $region40
      $region39: #{pkt_forward.2} parent=27 // pred_region
        _
      $region40: #{pkt_forward.2} parent=27 // pred_fallthru
        _
      // Predicated region
      $region41: #{pkt_forward.2} parent=27 // pred_check
        %p967 = pneg %p156
      $region42: #{pkt_forward.2} parent=27 // pred_check_branch
        %969 = sbr.rel (%p967) target = $region44
      $region43: #{pkt_forward.2} parent=27 // pred_region
        _
      $region44: #{pkt_forward.2} parent=27 // pred_fallthru
        _
      // Predicated region
      $region45: #{pkt_forward.2} parent=27 // pred_check
        %p970 = pneg %p184
      $region46: #{pkt_forward.2} parent=27 // pred_check_branch
        %972 = sbr.rel (%p970) target = $region48
      $region47: #{pkt_forward.2} parent=27 // pred_region
        %s973 = smul.u32 2, %s23
      $region48: #{pkt_forward.2} parent=27 // pred_fallthru
        _
      // Predicated region
      $region49: #{pkt_forward.2} parent=27 // pred_check
        %p974 = pneg %p212
      $region50: #{pkt_forward.2} parent=27 // pred_check_branch
        %976 = sbr.rel (%p974) target = $region52
      $region51: #{pkt_forward.2} parent=27 // pred_region
        %s977 = smul.u32 2, %s23
      $region52: #{pkt_forward.2} parent=27 // pred_fallthru
        _
    $region28: #{pkt_forward.2} parent=5 // pred_fallthru
      _
    %p978 = scmp.le.s32.totalorder 2, %s13
    // Predicated region
    $region53: #{pkt_forward.2} parent=5 // pred_check
      %p979 = pneg %p978
    $region54: #{pkt_forward.2} parent=5 // pred_check_branch
      %981 = sbr.rel (%p979) target = $region56
    $region55: #{pkt_forward.2} parent=5 // pred_region
      %s982 = ssub.s32 %s13, 2
      // Predicated region
      $region57: #{pkt_forward.2} parent=55 // pred_check
        %p983 = pneg %p110
      $region58: #{pkt_forward.2} parent=55 // pred_check_branch
        %985 = sbr.rel (%p983) target = $region60
      $region59: #{pkt_forward.2} parent=55 // pred_region
        %p986 = scmp.lt.s32.totalorder %s24, 1
        %s987 = scalar_select %p986, %s24, 1
        %s988 = scalar_lea.vmem %s2, %s987
      $region60: #{pkt_forward.2} parent=55 // pred_fallthru
        _
      // Predicated region
      $region61: #{pkt_forward.2} parent=55 // pred_check
        %p989 = pneg %p136
      $region62: #{pkt_forward.2} parent=55 // pred_check_branch
        %991 = sbr.rel (%p989) target = $region64
      $region63: #{pkt_forward.2} parent=55 // pred_region
        %p992 = scmp.lt.s32.totalorder %s24, 1
        %s993 = scalar_select %p992, %s24, 1
        %s994 = smul.addr %s993, 16
        %s995 = smul.addr %s994, 8
        %s996 = scalar_lea.vmem %s3, %s995
      $region64: #{pkt_forward.2} parent=55 // pred_fallthru
        _
      // Predicated region
      $region65: #{pkt_forward.2} parent=55 // pred_check
        %p997 = pneg %p162
      $region66: #{pkt_forward.2} parent=55 // pred_check_branch
        %999 = sbr.rel (%p997) target = $region68
      $region67: #{pkt_forward.2} parent=55 // pred_region
        %p1000 = scmp.lt.s32.totalorder %s24, 1
        %s1001 = scalar_select %p1000, %s24, 1
        %s1002 = smul.addr %s1001, 16
        %s1003 = smul.addr %s1002, 8
        %s1004 = scalar_lea.vmem %s4, %s1003
      $region68: #{pkt_forward.2} parent=55 // pred_fallthru
        _
      // Predicated region
      $region69: #{pkt_forward.2} parent=55 // pred_check
        %p1005 = pneg %p190
      $region70: #{pkt_forward.2} parent=55 // pred_check_branch
        %1007 = sbr.rel (%p1005) target = $region72
      $region71: #{pkt_forward.2} parent=55 // pred_region
        %s1008 = smul.u32 2, %s25
        %p1009 = scmp.lt.s32.totalorder %s24, 1
        %s1010 = scalar_select %p1009, %s24, 1
        %p1011 = scmp.lt.s32.totalorder %s1008, 1
        %s1012 = scalar_select %p1011, %s1008, 1
        %s1013 = smul.addr %s1010, 2
        %s1014 = sadd.s32 %s1012, %s1013
        %s1015 = scalar_lea.vmem %s5, %s1014
      $region72: #{pkt_forward.2} parent=55 // pred_fallthru
        _
      // Predicated region
      $region73: #{pkt_forward.2} parent=55 // pred_check
        %p1016 = pneg %p218
      $region74: #{pkt_forward.2} parent=55 // pred_check_branch
        %1018 = sbr.rel (%p1016) target = $region76
      $region75: #{pkt_forward.2} parent=55 // pred_region
        %s1019 = smul.u32 2, %s25
        %p1020 = scmp.lt.s32.totalorder %s24, 1
        %s1021 = scalar_select %p1020, %s24, 1
        %p1022 = scmp.lt.s32.totalorder %s1019, 1
        %s1023 = scalar_select %p1022, %s1019, 1
        %s1024 = smul.addr %s1021, 2
        %s1025 = sadd.s32 %s1023, %s1024
        %s1026 = scalar_lea.vmem %s6, %s1025
      $region76: #{pkt_forward.2} parent=55 // pred_fallthru
        _
    $region56: #{pkt_forward.2} parent=5 // pred_fallthru
      _
  $region6: #{pkt_forward.2} parent=0 // loop_footer
    %s17 = sadd.s32 1, %s13
  $region7: #{pkt_forward.2} parent=0 // loop_footer_branch
    %12 = sbr.rel target = $region3
  $region8: #{pkt_forward.2} parent=0 // loop_exit
    _

// kernel: pkt_forward.3
$region0: #{pkt_forward.3}
  #allocation0 [shape = 'u32[]', space=smem, size = 0x4, offset = 0x4, fixed_abs, tag = 'smem constant byte address 0x4 - core index']
  #allocation1 [shape = 'u32[144,128]{1,0:T(1,128)}', space=vmem, size = 0x12000, scoped, tag = 'internal scratch']
  %s0 = inlined_call_operand.vmem [shape: f32[8,128], index: 0, kind: input, shape index: {}]
  %s1 = inlined_call_operand.vmem [shape: f32[8,128], index: 1, kind: input, shape index: {}]
  %s2 = inlined_call_operand.vmem [shape: f32[128,128], index: 2, kind: input, shape index: {}]
  %s3 = inlined_call_operand.vmem [shape: f32[1,128], index: 3, kind: input, shape index: {}]
  %s4 = inlined_call_operand.vmem [shape: f32[10,512], index: 4, kind: input, shape index: {}]
  %s5 = inlined_call_operand.vmem [shape: f32[10,1], index: 5, kind: input, shape index: {}]
  %s6 = inlined_call_operand.vmem [shape: f32[1,512], index: 6, kind: input, shape index: {}]
  %s7 = inlined_call_operand.hbm [shape: f32[1,1], index: 7, kind: output, shape index: {0}]
  %s8 = inlined_call_operand.hbm [shape: f32[1,1], index: 8, kind: output, shape index: {1}]
  %9 = xla_tuple %s7, %s8
  %s10 = sld [smem:[#allocation0]]
  $region46: #{pkt_forward.3} parent=0
    _
  %s12 = ssub.s32 1, %s10
  %s13 = scalar_select 0, %s12, %s10
  $region1: #{pkt_forward.3} parent=0
    #allocation2 [shape = 'u8[512]{0}', space=vmem, size = 0x400, scoped, tag = 'output window, operand 0, single buffered']
    #allocation3 [shape = 's32[1]{0}', space=sflag, size = 0x4, scoped, tag = 'scoped memory for pkt_forward.3']
    #allocation4 [shape = 'u8[512]{0}', space=vmem, size = 0x400, scoped, tag = 'output window, operand 1, single buffered']
    #allocation5 [shape = 's32[1]{0}', space=sflag, size = 0x4, scoped, tag = 'scoped memory for pkt_forward.3']
    %14 = vsyncpa [#allocation3], 0
    %15 = vsyncpa [#allocation5], 0
    // Predicated region
    $region2: #{pkt_forward.3} parent=1 // pred_check
      _
    $region3: #{pkt_forward.3} parent=1 // pred_check_branch
      %17 = sbr.rel (0) target = $region5
    $region4: #{pkt_forward.3} parent=1 // pred_region
      _
    $region5: #{pkt_forward.3} parent=1 // pred_fallthru
      _
    // Predicated region
    $region6: #{pkt_forward.3} parent=1 // pred_check
      _
    $region7: #{pkt_forward.3} parent=1 // pred_check_branch
      %19 = sbr.rel (0) target = $region9
    $region8: #{pkt_forward.3} parent=1 // pred_region
      _
    $region9: #{pkt_forward.3} parent=1 // pred_fallthru
      _
    // Predicated region
    $region10: #{pkt_forward.3} parent=1 // pred_check
      _
    $region11: #{pkt_forward.3} parent=1 // pred_check_branch
      %21 = sbr.rel (0) target = $region13
    $region12: #{pkt_forward.3} parent=1 // pred_region
      _
    $region13: #{pkt_forward.3} parent=1 // pred_fallthru
      _
    // Predicated region
    $region14: #{pkt_forward.3} parent=1 // pred_check
      _
    $region15: #{pkt_forward.3} parent=1 // pred_check_branch
      %23 = sbr.rel (0) target = $region17
    $region16: #{pkt_forward.3} parent=1 // pred_region
      _
    $region17: #{pkt_forward.3} parent=1 // pred_fallthru
      _
    // Predicated region
    $region18: #{pkt_forward.3} parent=1 // pred_check
      _
    $region19: #{pkt_forward.3} parent=1 // pred_check_branch
      %25 = sbr.rel (0) target = $region21
    $region20: #{pkt_forward.3} parent=1 // pred_region
      _
    $region21: #{pkt_forward.3} parent=1 // pred_fallthru
      _
    // Predicated region
    $region22: #{pkt_forward.3} parent=1 // pred_check
      _
    $region23: #{pkt_forward.3} parent=1 // pred_check_branch
      %27 = sbr.rel (0) target = $region25
    $region24: #{pkt_forward.3} parent=1 // pred_region
      _
    $region25: #{pkt_forward.3} parent=1 // pred_fallthru
      _
    // Predicated region
    $region26: #{pkt_forward.3} parent=1 // pred_check
      _
    $region27: #{pkt_forward.3} parent=1 // pred_check_branch
      %29 = sbr.rel (0) target = $region29
    $region28: #{pkt_forward.3} parent=1 // pred_region
      _
    $region29: #{pkt_forward.3} parent=1 // pred_fallthru
      _
    %v30 = vld [vmem:[%s1] sm:$0xff]
    %v31 = vld [vmem:[%s2] sm:$0xff]
    %v32 = vld [vmem:[%s2 + $0x8] sm:$0xff]
    %v33 = vld [vmem:[%s2 + $0x10] sm:$0xff]
    %v34 = vld [vmem:[%s2 + $0x18] sm:$0xff]
    %v35 = vld [vmem:[%s2 + $0x20] sm:$0xff]
    %v36 = vld [vmem:[%s2 + $0x28] sm:$0xff]
    %v37 = vld [vmem:[%s2 + $0x30] sm:$0xff]
    %v38 = vld [vmem:[%s2 + $0x38] sm:$0xff]
    %v39 = vld [vmem:[%s2 + $0x40] sm:$0xff]
    %v40 = vld [vmem:[%s2 + $0x48] sm:$0xff]
    %v41 = vld [vmem:[%s2 + $0x50] sm:$0xff]
    %v42 = vld [vmem:[%s2 + $0x58] sm:$0xff]
    %v43 = vld [vmem:[%s2 + $0x60] sm:$0xff]
    %v44 = vld [vmem:[%s2 + $0x68] sm:$0xff]
    %v45 = vld [vmem:[%s2 + $0x70] sm:$0xff]
    %v46 = vld [vmem:[%s2 + $0x78] sm:$0xff]
    %v47 = vld [vmem:[%s3] sm:$0x1]
    %v49 = vlaneseq
    %v50 = vshrl.u32 %v49, 7
    %v51 = vsub.s32 0, %v50
    %v52 = vrot.slane %v47, %v51
    %54 = vmatprep.subr.mxu0 0.0
    %55 = vmatpush1.msra.mxu0 %v31
    %56 = vmatprep.subr.mxu0 0.0
    %57 = vmatpush1.msra.mxu0 %v32
    %58 = vmatprep.subr.mxu0 0.0
    %59 = vmatpush1.msra.mxu0 %v33
    %60 = vmatprep.subr.mxu0 0.0
    %61 = vmatpush1.msra.mxu0 %v34
    %62 = vmatprep.subr.mxu0 0.0
    %63 = vmatpush1.msra.mxu0 %v35
    %64 = vmatprep.subr.mxu0 0.0
    %65 = vmatpush1.msra.mxu0 %v36
    %66 = vmatprep.subr.mxu0 0.0
    %67 = vmatpush1.msra.mxu0 %v37
    %68 = vmatprep.subr.mxu0 0.0
    %69 = vmatpush1.msra.mxu0 %v38
    %70 = vmatprep.subr.mxu0 0.0
    %71 = vmatpush1.msra.mxu0 %v39
    %72 = vmatprep.subr.mxu0 0.0
    %73 = vmatpush1.msra.mxu0 %v40
    %74 = vmatprep.subr.mxu0 0.0
    %75 = vmatpush1.msra.mxu0 %v41
    %76 = vmatprep.subr.mxu0 0.0
    %77 = vmatpush1.msra.mxu0 %v42
    %78 = vmatprep.subr.mxu0 0.0
    %79 = vmatpush1.msra.mxu0 %v43
    %80 = vmatprep.subr.mxu0 0.0
    %81 = vmatpush1.msra.mxu0 %v44
    %82 = vmatprep.subr.mxu0 0.0
    %83 = vmatpush1.msra.mxu0 %v45
    %84 = vmatprep.subr.mxu0 0.0
    %85 = vmatpush1.msra.mxu0 %v46
    %86 = vmatprep.subr.mxu0 0.0
    %87 = vmatpush1.msra.mxu0 0.0
    %88 = vmatprep.subr.mxu0 0.0
    %89 = vmatpush1.msra.mxu0 0.0
    %90 = vmatprep.subr.mxu0 0.0
    %91 = vmatpush1.msra.mxu0 0.0
    %92 = vmatprep.subr.mxu0 0.0
    %93 = vmatpush1.msra.mxu0 0.0
    %94 = vmatprep.subr.mxu0 0.0
    %95 = vmatpush1.msra.mxu0 0.0
    %96 = vmatprep.subr.mxu0 0.0
    %97 = vmatpush1.msra.mxu0 0.0
    %98 = vmatprep.subr.mxu0 0.0
    %99 = vmatpush1.msra.mxu0 0.0
    %100 = vmatprep.subr.mxu0 0.0
    %101 = vmatpush1.msra.mxu0 0.0
    %102 = vmatprep.subr.mxu0 0.0
    %103 = vmatpush1.msra.mxu0 0.0
    %104 = vmatprep.subr.mxu0 0.0
    %105 = vmatpush1.msra.mxu0 0.0
    %106 = vmatprep.subr.mxu0 0.0
    %107 = vmatpush1.msra.mxu0 0.0
    %108 = vmatprep.subr.mxu0 0.0
    %109 = vmatpush1.msra.mxu0 0.0
    %110 = vmatprep.subr.mxu0 0.0
    %111 = vmatpush1.msra.mxu0 0.0
    %112 = vmatprep.subr.mxu0 0.0
    %113 = vmatpush1.msra.mxu0 0.0
    %114 = vmatprep.subr.mxu0 0.0
    %115 = vmatpush1.msra.mxu0 0.0
    %116 = vmatprep.subr.mxu0 0.0
    %117 = vmatpush1.msra.mxu0 0.0
    %118 = vmatprep.mubr.f32.mxu0 0.0
    %119 = vmatmul.mubr.f32.gmra.mrb[0].mxu0 %v30
    %v120 = vpop.f32.mrb[0].mxu0
    %v121 = vadd.f32 %v52, %v120
    %v122 = vpop.f32.mrb[0].mxu0
    %123 = vdwg.mxu0
    %v124 = vlaneseq
    %v125 = vshrl.u32 %v124, 7
    %vm126 = vcmp.lt.s32.totalorder %v125, 2
    %v127 = vld [vmem:[%s0] sm:$0xff]
    %v128 = vsub.f32 %v127, %v121
    %v129 = vsel %vm126, 1, 0
    %vm130 = vcmp.eq.s32.totalorder %v129, 1
    %v131 = vsel %vm130, %v128, 0.0
    %v132 = vmul.f32 %v131, %v131
    %133 = vadd.xlane.f32.xlu0 %v132
    %v134 = vpop.xlane.xlu0 %133
    %v135 = vrot.slane %v134, 4
    %v136 = vadd.f32 %v134, %v135
    %v137 = vrot.slane %v136, 2
    %v138 = vadd.f32 %v136, %v137
    %v139 = vrot.slane %v138, 1
    %v140 = vadd.f32 %v138, %v139
    %vm141 = vcmask 0
    %142 = vst.msk [vmem:[#allocation2] sm:$0x1] %vm141, %v140
    %v143 = vld [vmem:[%s5] sm:$0xff]
    %v144 = vld [vmem:[%s5 + $0x8] sm:$0x3]
    %v145 = vld [vmem:[%s4] sm:$0xff]
    %v146 = vld [vmem:[%s4 + $0x8] sm:$0xff]
    %v147 = vld [vmem:[%s4 + $0x10] sm:$0xff]
    %v148 = vld [vmem:[%s4 + $0x18] sm:$0xff]
    %v149 = vld [vmem:[%s4 + $0x20] sm:$0x3]
    %v150 = vld [vmem:[%s4 + $0x28] sm:$0x3]
    %v151 = vld [vmem:[%s4 + $0x30] sm:$0x3]
    %v152 = vld [vmem:[%s4 + $0x38] sm:$0x3]
    %154 = vset.pattern.permute.xlu0 0
    %155 = vperm.xlu0 %154, %v143
    %v156 = vpop.permute.xlu0 %155
    %159 = vset.pattern.permute.xlu0 0
    %160 = vperm.xlu0 %159, %v144
    %v161 = vpop.permute.xlu0 %160
    %v163 = vmul.f32 %v156, %v145
    %v164 = vmul.f32 %v156, %v146
    %v165 = vmul.f32 %v156, %v147
    %v166 = vmul.f32 %v156, %v148
    %v167 = vmul.f32 %v161, %v149
    %v168 = vmul.f32 %v161, %v150
    %v169 = vmul.f32 %v161, %v151
    %v170 = vmul.f32 %v161, %v152
    %vm171 = vcmask 1041408
    %v172 = vsel %vm171, %v167, 0.0
    %v173 = vadd.f32 %v163, %v172
    %v174 = vrot.slane %v173, 4
    %v175 = vadd.f32 %v173, %v174
    %v176 = vrot.slane %v175, 2
    %v177 = vadd.f32 %v175, %v176
    %v178 = vrot.slane %v177, 1
    %v179 = vadd.f32 %v177, %v178
    %v180 = vsel %vm171, %v168, 0.0
    %v181 = vadd.f32 %v164, %v180
    %v182 = vrot.slane %v181, 4
    %v183 = vadd.f32 %v181, %v182
    %v184 = vrot.slane %v183, 2
    %v185 = vadd.f32 %v183, %v184
    %v186 = vrot.slane %v185, 1
    %v187 = vadd.f32 %v185, %v186
    %v188 = vsel %vm171, %v169, 0.0
    %v189 = vadd.f32 %v165, %v188
    %v190 = vrot.slane %v189, 4
    %v191 = vadd.f32 %v189, %v190
    %v192 = vrot.slane %v191, 2
    %v193 = vadd.f32 %v191, %v192
    %v194 = vrot.slane %v193, 1
    %v195 = vadd.f32 %v193, %v194
    %v196 = vsel %vm171, %v170, 0.0
    %v197 = vadd.f32 %v166, %v196
    %v198 = vrot.slane %v197, 4
    %v199 = vadd.f32 %v197, %v198
    %v200 = vrot.slane %v199, 2
    %v201 = vadd.f32 %v199, %v200
    %v202 = vrot.slane %v201, 1
    %v203 = vadd.f32 %v201, %v202
    %v204 = vld [vmem:[%s6] sm:$0xf]
    %v209 = vcombine.low %v179, %v187
    %v210 = vcombine.low %v195, %v203
    %v212 = vunpack.c.l.s4 1966171168
    %v213 = vunpack.c.0.s8 %v212
    %v214 = vlaneseq
    %v215 = vshrl.u32 %v214, 7
    %v216 = vsub.s32 %v213, %v215
    %v217 = vrot.slane %v209, %v216
    %v219 = vunpack.c.l.s4 1966171168
    %v220 = vunpack.c.0.s8 %v219
    %v221 = vlaneseq
    %v222 = vshrl.u32 %v221, 7
    %v223 = vsub.s32 %v220, %v222
    %v224 = vrot.slane %v210, %v223
    %v225 = vcombine.low %v217, %v224
    %v227 = vunpack.c.l.s4 1966171168
    %v228 = vunpack.c.0.s8 %v227
    %v229 = vlaneseq
    %v230 = vshrl.u32 %v229, 7
    %v231 = vsub.s32 %v228, %v230
    %v232 = vrot.slane %v225, %v231
    %v234 = vsub.f32 %v204, %v232
    %v235 = vmul.f32 %v234, %v234
    %v237 = vlaneseq
    %v238 = vshrl.u32 %v237, 7
    %v239 = vsub.s32 0, %v238
    %v240 = vrot.slane %v235, %v239
    %v241 = vlaneseq
    %v242 = vshrl.u32 %v241, 7
    %v243 = vsub.s32 1, %v242
    %v244 = vrot.slane %v235, %v243
    %v245 = vlaneseq
    %v246 = vshrl.u32 %v245, 7
    %v247 = vsub.s32 2, %v246
    %v248 = vrot.slane %v235, %v247
    %v249 = vlaneseq
    %v250 = vshrl.u32 %v249, 7
    %v251 = vsub.s32 3, %v250
    %v252 = vrot.slane %v235, %v251
    %vm257 = vcmask 1040384
    %v258 = vsel %vm257, %v240, 0.0
    %v259 = vsel %vm257, %v244, 0.0
    %v260 = vadd.f32 %v258, %v259
    %v261 = vsel %vm257, %v248, 0.0
    %v262 = vadd.f32 %v260, %v261
    %v263 = vsel %vm257, %v252, 0.0
    %v264 = vadd.f32 %v262, %v263
    %265 = vadd.xlane.f32.xlu0 %v264
    %v266 = vpop.xlane.xlu0 %265
    %267 = vst.msk [vmem:[#allocation4] sm:$0x1] %vm141, %v266
    // Predicated region
    $region30: #{pkt_forward.3} parent=1 // pred_check
      _
    $region31: #{pkt_forward.3} parent=1 // pred_check_branch
      %269 = sbr.rel (0) target = $region33
    $region32: #{pkt_forward.3} parent=1 // pred_region
      %s271 = ssub.s32 16, 16
      %272 = vsyncadd [#allocation3], %s271
      %s274 = sshll.u32 [#allocation2], 4
      %s275 = int_to_ptr.vmem [resolvable:$true] %s274
      %277 = dma.vmem_to_hbm [thread:$0]  %s275, 16, %s7, [#allocation3]
    $region33: #{pkt_forward.3} parent=1 // pred_fallthru
      _
    // Predicated region
    $region34: #{pkt_forward.3} parent=1 // pred_check
      _
    $region35: #{pkt_forward.3} parent=1 // pred_check_branch
      %279 = sbr.rel (0) target = $region37
    $region36: #{pkt_forward.3} parent=1 // pred_region
      %s281 = ssub.s32 16, 16
      %282 = vsyncadd [#allocation5], %s281
      %s284 = sshll.u32 [#allocation4], 4
      %s285 = int_to_ptr.vmem [resolvable:$true] %s284
      %287 = dma.vmem_to_hbm [thread:$0]  %s285, 16, %s8, [#allocation5]
    $region37: #{pkt_forward.3} parent=1 // pred_fallthru
      _
    // Predicated region
    $region38: #{pkt_forward.3} parent=1 // pred_check
      _
    $region39: #{pkt_forward.3} parent=1 // pred_check_branch
      %289 = sbr.rel (0) target = $region41
    $region40: #{pkt_forward.3} parent=1 // pred_region
      %290 = dma.done [#allocation3], 16
    $region41: #{pkt_forward.3} parent=1 // pred_fallthru
      _
    // Predicated region
    $region42: #{pkt_forward.3} parent=1 // pred_check
      _
    $region43: #{pkt_forward.3} parent=1 // pred_check_branch
      %292 = sbr.rel (0) target = $region45
    $region44: #{pkt_forward.3} parent=1 // pred_region
      %293 = dma.done [#allocation5], 16
    $region45: #{pkt_forward.3} parent=1 // pred_fallthru
      _
    %294 = vsyncpa [#allocation3], 1
    %295 = vsyncpa [#allocation5], 1

</llo_original>
